<compile_context>
chip_gen: v6e
topology: v6e:2x2x1
jax: 0.10.0
libtpu: 0.0.40
codegen_flags: <defaults>
</compile_context>

<pallas_src>
import functools

import jax
import jax.numpy as jnp
from jax.experimental import pallas as pl
from jax.experimental.pallas import tpu as pltpu

_LANES = 128
_SUBLANES = 8


def _round_up(x, m):
    return (x + m - 1) // m * m


def _cdiv(a, b):
    return -(-a // b)


_VMEM_CAP = None


def _vmem_capacity_bytes():
    """Physical VMEM per TensorCore; used for generation-aware caps."""
    global _VMEM_CAP
    if _VMEM_CAP is None:
        try:
            info = pltpu.get_tpu_info()
            _VMEM_CAP = int(getattr(info, "vmem_capacity_bytes", 128 << 20))
        except Exception:
            _VMEM_CAP = 128 << 20
    return _VMEM_CAP


def _dice_sums_kernel(logits_ref, target_ref, inter_ref, union_ref, *,
                      spatial_size, group_rows, all_tiles_full,
                      approx_recip, unroll):
    """Accumulate per-class inter/union partial sums for one (batch, split).

    logits_ref : (1, C, tr, 128)  native dtype (f32/bf16), widened on-chip
    target_ref : (1, 1, tr, 128)  integer labels in their native width
    inter_ref  : (1, C, 8, 128)   f32 lane/sublane-dense accumulator (output)
    union_ref  : (1, C, 8, 128)   f32
    """
    p = pl.program_id(1)
    t = pl.program_id(2)
    n_t = pl.num_programs(2)

    C = logits_ref.shape[1]
    tr = logits_ref.shape[2]
    G = group_rows                      # 8 (f32/i32), 16 (bf16/i16), 32 (i8)
    n_grp = tr // G

    @pl.when(t == 0)
    def _():
        inter_ref[...] = jnp.zeros_like(inter_ref)
        union_ref[...] = jnp.zeros_like(union_ref)

    tile_idx = p * n_t + t
    block_start = tile_idx * (tr * _LANES)

    def group_sums(g, masked):
        """Dice partials for rows [g*G, (g+1)*G): two C-tuples of (8,128) f32."""
        start = g * G
        if not isinstance(start, int):
            start = pl.multiple_of(start, G)

        xs = [logits_ref[0, c, pl.ds(start, G), :].astype(jnp.float32)
              for c in range(C)]
        # Widen labels on-chip; the HBM stream stays at the native width.
        tgt = target_ref[0, 0, pl.ds(start, G), :].astype(jnp.int32)

        # Numerically stable softmax over the class axis — pure elementwise
        # VPU work across full vregs (no XLU cross-lane reductions).
        m = xs[0]
        for c in range(1, C):
            m = jnp.maximum(m, xs[c])
        es = [jnp.exp(x - m) for x in xs]
        denom = es[0]
        for c in range(1, C):
            denom = denom + es[c]
        # One reciprocal per spatial column; approx=True keeps it on the EUP.
        inv = pl.reciprocal(denom, approx=True) if approx_recip else 1.0 / denom

        if masked:
            row = jax.lax.broadcasted_iota(jnp.int32, (G, _LANES), 0)
            lane = jax.lax.broadcasted_iota(jnp.int32, (G, _LANES), 1)
            gidx = block_start + start * _LANES + row * _LANES + lane
            valid = gidx < spatial_size
        else:
            valid = None

        inters, unions = [], []
        for c in range(C):
            pred_c = es[c] * inv
            oh_c = (tgt == c).astype(jnp.float32)
            ic = pred_c * oh_c
            uc = pred_c + oh_c
            if valid is not None:
                # select (not multiply) so garbage/NaN in out-of-range slots
                # of a partial tile can never leak into the sums.
                ic = jnp.where(valid, ic, 0.0)
                uc = jnp.where(valid, uc, 0.0)
            # (G,128) -> (8,128): 0 adds for G==8, 1 for G==16, 3 for G==32.
            # Strip-mining already made this tiny; no MXU offload needed.
            ric, ruc = ic[0:_SUBLANES], uc[0:_SUBLANES]
            for k in range(1, G // _SUBLANES):
                ric = ric + ic[k * _SUBLANES:(k + 1) * _SUBLANES]
                ruc = ruc + uc[k * _SUBLANES:(k + 1) * _SUBLANES]
            inters.append(ric)
            unions.append(ruc)
        return tuple(inters), tuple(unions)

    def run(masked):
        if n_grp == 1:
            acc_i, acc_u = group_sums(0, masked)
        else:
            def body(g, carry):
                ai, au = carry
                di, du = group_sums(g, masked)
                return (tuple(a + d for a, d in zip(ai, di)),
                        tuple(a + d for a, d in zip(au, du)))
            zeros = tuple(jnp.zeros((_SUBLANES, _LANES), jnp.float32)
                          for _ in range(C))
            acc_i, acc_u = jax.lax.fori_loop(
                0, n_grp, body, (zeros, zeros),
                unroll=max(1, min(unroll, n_grp)))
        for c in range(C):
            inter_ref[0, c] += acc_i[c]
            union_ref[0, c] += acc_u[c]

    if all_tiles_full:
        run(masked=False)            # static: every tile fully in-bounds
    else:
        is_full = block_start + tr * _LANES <= spatial_size

        @pl.when(is_full)
        def _():
            run(masked=False)        # interior tiles: unmasked fast path

        @pl.when(jnp.logical_not(is_full))
        def _():
            run(masked=True)         # final/clamped tile: validity mask


class DiceLoss:
    """JAX/Pallas port of the PyTorch DiceLoss.forward (mask=None path)."""

    def __init__(self, nclass, class_weights=None, smooth=1e-5,
                 tile_rows=None, spatial_splits=None,
                 approx_reciprocal=True, group_unroll=4):
        self.smooth = float(smooth)
        self.nclass = int(nclass)
        # None -> auto-size so a (logits+target) block is ~2 MiB (256-512 rows).
        self.tile_rows = tile_rows
        # None -> auto: 2 spatial splits on 2-TensorCore chips when N can't
        # keep both cores busy; 1 on single-TC chips (v5e/v6e).
        self.spatial_splits = spatial_splits
        self.approx_reciprocal = bool(approx_reciprocal)
        self.group_unroll = int(group_unroll)
        if class_weights is None:
            self.class_weights = jnp.ones((1, nclass), jnp.float32)
        else:
            cw = jnp.asarray(class_weights, jnp.float32)
            assert cw.shape[0] == nclass
            # Parity note: like the PyTorch module, forward() never applies
            # class_weights; stored only for attribute compatibility.
            self.class_weights = cw

    def __call__(self, logits, target, mask=None):
        # TODO(synk): optional `mask` argument path is not implemented in-kernel.
        assert mask is None, "mask path not implemented"
        N, C = int(logits.shape[0]), int(logits.shape[1])
        assert C == self.nclass
        S = 1
        for d in logits.shape[2:]:
            S *= int(d)

        # Stream logits in their native dtype (bf16 stays bf16 -> half the HBM
        # reads); the kernel widens each group to f32 on-chip.
        logits_f = logits.reshape(N, C, S)
        if (logits_f.dtype.itemsize > 4
                or not jnp.issubdtype(logits_f.dtype, jnp.floating)):
            logits_f = logits_f.astype(jnp.float32)

        # Stream labels in their native narrow dtype (uint8 labels -> 1 B/elem
        # of HBM instead of 4); unsupported dtypes fall back to int32.
        target_i = target.reshape(N, S)
        if target_i.dtype not in (jnp.int8, jnp.uint8, jnp.int16, jnp.int32):
            target_i = target_i.astype(jnp.int32)

        lg_it = jnp.dtype(logits_f.dtype).itemsize
        tg_it = jnp.dtype(target_i.dtype).itemsize
        gran_map = {4: 8, 2: 16, 1: 32}
        gran = max(gran_map[lg_it], gran_map[tg_it])
        # Very large C with a 32-row group would blow the vreg file; prefer a
        # wider label stream (8/16-row groups) in that corner case.
        if C * (gran // _SUBLANES) > 32 and gran > gran_map[lg_it]:
            target_i = target_i.astype(jnp.int32)
            tg_it = 4
            gran = max(gran_map[lg_it], gran_map[tg_it])

        S128 = _round_up(S, _LANES)
        if S128 != S:
            # TODO(synk): ragged S (not a multiple of 128) takes one padding
            # copy; typical volumes are 128-divisible and skip this entirely.
            logits_f = jnp.pad(logits_f, ((0, 0), (0, 0), (0, S128 - S)))
            target_i = jnp.pad(target_i, ((0, 0), (0, S128 - S)))
        R = S128 // _LANES
        logits4 = logits_f.reshape(N, C, R, _LANES)   # spatial fills sublane+lane
        target4 = target_i.reshape(N, 1, R, _LANES)

        # Big tiles (256-512 rows) amortize the ~0.35 us grid-step overhead;
        # strip-mining keeps vreg pressure independent of the tile size.
        if self.tile_rows is None:
            bytes_per_row = _LANES * (C * lg_it + tg_it)
            tr = max(256, min(512, (2 << 20) // bytes_per_row))
        else:
            tr = int(self.tile_rows)
        tr = min(_round_up(max(tr, gran), gran), _round_up(R, gran))
        n_row_tiles = _cdiv(R, tr)

        vmem_cap = _vmem_capacity_bytes()
        two_core_chip = vmem_cap <= (64 << 20)   # v7x-style: 2 TCs, 64 MiB VMEM

        if self.spatial_splits is None:
            p_req = 2 if (two_core_chip and (N == 1 or N % 2 == 1)) else 1
        else:
            p_req = int(self.spatial_splits)
        P = max(1, min(p_req, n_row_tiles))
        T = _cdiv(n_row_tiles, P)

        all_full = (S % (tr * _LANES) == 0) and (n_row_tiles % P == 0)
        max_tile = n_row_tiles - 1

        def in_map(n, p, t):
            # Clamp so a fully out-of-range split re-reads a valid tile (its
            # contribution is masked to zero in-kernel) — never an OOB DMA.
            return (n, 0, jnp.minimum(p * T + t, max_tile), 0)

        def out_map(n, p, t):
            return (n * P + p, 0, 0, 0)

        kernel = functools.partial(
            _dice_sums_kernel, spatial_size=S, group_rows=gran,
            all_tiles_full=all_full, approx_recip=self.approx_reciprocal,
            unroll=self.group_unroll)

        # Generation-aware scoped-VMEM cap (only when the working set is large):
        # leave headroom inside v7x's 64 MiB physical VMEM; allow bigger tiles
        # on v5e/v6e (128 MiB physical).
        blk_bytes = (2 * tr * _LANES * (C * lg_it + tg_it)
                     + 4 * C * _SUBLANES * _LANES * 4)
        cp_kwargs = {}
        if blk_bytes > 8 * 1024 * 1024:
            cap = (48 << 20) if two_core_chip else (100 << 20)
            cp_kwargs["vmem_limit_bytes"] = int(min(2 * blk_bytes + (4 << 20), cap))

        inter, union = pl.pallas_call(
            kernel,
            grid=(N, P, T),
            in_specs=[
                pl.BlockSpec((1, C, tr, _LANES), in_map),
                pl.BlockSpec((1, 1, tr, _LANES), in_map),
            ],
            out_specs=[
                pl.BlockSpec((1, C, _SUBLANES, _LANES), out_map),
                pl.BlockSpec((1, C, _SUBLANES, _LANES), out_map),
            ],
            out_shape=[
                jax.ShapeDtypeStruct((N * P, C, _SUBLANES, _LANES), jnp.float32),
                jax.ShapeDtypeStruct((N * P, C, _SUBLANES, _LANES), jnp.float32),
            ],
            compiler_params=pltpu.CompilerParams(
                dimension_semantics=("parallel", "parallel", "arbitrary"),
                **cp_kwargs),
        )(logits4, target4)

        # Tiny final reduction of the lane/sublane-dense partials in plain JAX.
        inter = inter.reshape(N, P, C, _SUBLANES, _LANES).sum(axis=(1, 3, 4))
        union = union.reshape(N, P, C, _SUBLANES, _LANES).sum(axis=(1, 3, 4))
        dice = (2.0 * inter + self.smooth) / (union + self.smooth)
        return 1.0 - dice.mean()


if __name__ == "__main__":
    def reference(logits, target, smooth=1e-5):
        N, C = logits.shape[0], logits.shape[1]
        lg = logits.reshape(N, C, -1).astype(jnp.float32)
        pred = jax.nn.softmax(lg, axis=1)
        oh = jax.nn.one_hot(target.reshape(N, -1).astype(jnp.int32), C, axis=1,
                            dtype=jnp.float32)
        inter = (pred * oh).sum(2)
        union = (pred + oh).sum(2)
        return 1.0 - ((2.0 * inter + smooth) / (union + smooth)).mean()

    cases = [
        # (N,C,D,H,W), logits dtype, target dtype, target has channel dim, kwargs
        ((2, 4, 10, 8, 16), jnp.float32, jnp.int32, False, {}),      # ragged row tile (mask path, fori loop)
        ((1, 3, 6, 24, 32), jnp.bfloat16, jnp.int32, False,
         dict(tile_rows=16, spatial_splits=2)),                      # bf16 stream + explicit spatial split
        ((2, 4, 3, 5, 7), jnp.float32, jnp.int32, True, {}),         # S % 128 != 0 pad fallback
        ((2, 4, 16, 16, 8), jnp.float32, jnp.int32, False, {}),      # exact tiling, unmasked fast path
        ((1, 3, 8, 16, 32), jnp.float32, jnp.uint8, False, {}),      # narrow (uint8) label stream
        ((1, 2, 32, 64, 64), jnp.float32, jnp.int32, False, {}),     # big volume: 512-row tiles + unrolled fori
    ]
    keys = jax.random.split(jax.random.PRNGKey(0), 2 * len(cases))
    for i, (shape, ldt, tdt, tgt_5d, kwargs) in enumerate(cases):
        N, C, D, H, W = shape
        logits = jax.random.normal(keys[2 * i], shape, jnp.float32).astype(ldt)
        tshape = (N, 1, D, H, W) if tgt_5d else (N, D, H, W)
        target = jax.random.randint(keys[2 * i + 1], tshape, 0, C,
                                    jnp.int32).astype(tdt)

        loss = DiceLoss(nclass=C, **kwargs)(logits, target)
        loss = jax.block_until_ready(loss)
        ref = reference(logits, target)
        # atol slack covers the EUP approximate-reciprocal softmax denominator.
        assert jnp.allclose(loss, ref, rtol=1e-4, atol=5e-5), (i, loss, ref)

    print("KERNEL_OK")
</pallas_src>

<mosaic_0001>
module attributes {stable_mosaic.version = 11 : i64} {
  func.func @_dice_sums_kernel(%arg0: i32, %arg1: i32, %arg2: i32, %arg3: memref<1x4x16x128xf32, #tpu.memory_space<vmem>>, %arg4: memref<1x1x16x128xi32, #tpu.memory_space<vmem>>, %arg5: memref<1x4x8x128xf32, #tpu.memory_space<vmem>>, %arg6: memref<1x4x8x128xf32, #tpu.memory_space<vmem>>) attributes {dimension_semantics = [#tpu.dimension_semantics<parallel>, #tpu.dimension_semantics<parallel>, #tpu.dimension_semantics<arbitrary>], iteration_bounds = array<i64: 2, 1, 1>, scalar_prefetch = 0 : i64, scratch_operands = 0 : i64, tpu.core_type = #tpu.core_type<tc>, window_params = [{transform_indices = @transform_0, window_bounds = array<i64: 1, 4, 16, 128>}, {transform_indices = @transform_1, window_bounds = array<i64: 1, 1, 16, 128>}, {transform_indices = @transform_2, window_bounds = array<i64: 1, 4, 8, 128>}, {transform_indices = @transform_3, window_bounds = array<i64: 1, 4, 8, 128>}]} {
    %c0_i32 = arith.constant 0 : i32
    %0 = arith.cmpi eq, %arg2, %c0_i32 : i32
    %1 = arith.extui %0 : i1 to i32
    %c0_i32_0 = arith.constant 0 : i32
    %2 = arith.cmpi ne, %1, %c0_i32_0 : i32
    scf.if %2 {
      %cst = arith.constant 0.000000e+00 : f32
      %13 = vector.broadcast %cst : f32 to vector<1x4x8x128xf32>
      %c0 = arith.constant 0 : index
      %c0_4 = arith.constant 0 : index
      %c0_5 = arith.constant 0 : index
      %c0_6 = arith.constant 0 : index
      %14 = vector.load %arg5[%c0, %c0_4, %c0_5, %c0_6] : memref<1x4x8x128xf32, #tpu.memory_space<vmem>>, vector<1x4x8x128xf32>
      tpu.vector_store %arg5[%c0, %c0_4, %c0_5, %c0_6], %13 {strides = array<i32>} : memref<1x4x8x128xf32, #tpu.memory_space<vmem>>, vector<1x4x8x128xf32>,
      %cst_7 = arith.constant 0.000000e+00 : f32
      %15 = vector.broadcast %cst_7 : f32 to vector<1x4x8x128xf32>
      %c0_8 = arith.constant 0 : index
      %c0_9 = arith.constant 0 : index
      %c0_10 = arith.constant 0 : index
      %c0_11 = arith.constant 0 : index
      %16 = vector.load %arg6[%c0_8, %c0_9, %c0_10, %c0_11] : memref<1x4x8x128xf32, #tpu.memory_space<vmem>>, vector<1x4x8x128xf32>
      tpu.vector_store %arg6[%c0_8, %c0_9, %c0_10, %c0_11], %15 {strides = array<i32>} : memref<1x4x8x128xf32, #tpu.memory_space<vmem>>, vector<1x4x8x128xf32>,
    } else {
    }
    %c1_i32 = arith.constant 1 : i32
    %3 = arith.muli %arg1, %c1_i32 : i32
    %4 = arith.addi %3, %arg2 : i32
    %c2048_i32 = arith.constant 2048 : i32
    %5 = arith.muli %4, %c2048_i32 : i32
    %c2048_i32_1 = arith.constant 2048 : i32
    %6 = arith.addi %5, %c2048_i32_1 : i32
    %c1280_i32 = arith.constant 1280 : i32
    %7 = arith.cmpi sle, %6, %c1280_i32 : i32
    %8 = arith.extui %7 : i1 to i32
    %c0_i32_2 = arith.constant 0 : i32
    %9 = arith.cmpi ne, %8, %c0_i32_2 : i32
    scf.if %9 {
      %cst = arith.constant 0.000000e+00 : f32
      %13 = vector.broadcast %cst : f32 to vector<8x128xf32>
      %cst_4 = arith.constant 0.000000e+00 : f32
      %14 = vector.broadcast %cst_4 : f32 to vector<8x128xf32>
      %cst_5 = arith.constant 0.000000e+00 : f32
      %15 = vector.broadcast %cst_5 : f32 to vector<8x128xf32>
      %cst_6 = arith.constant 0.000000e+00 : f32
      %16 = vector.broadcast %cst_6 : f32 to vector<8x128xf32>
      %c0_i32_7 = arith.constant 0 : i32
      %c8_i32 = arith.constant 8 : i32
      %17 = arith.muli %c0_i32_7, %c8_i32 : i32
      %18 = tpu.assume_multiple %17, 8 : i32
      %c0 = arith.constant 0 : index
      %c0_8 = arith.constant 0 : index
      %19 = arith.index_cast %18 : i32 to index
      %c0_9 = arith.constant 0 : index
      %20 = vector.load %arg3[%c0, %c0_8, %19, %c0_9] : memref<1x4x16x128xf32, #tpu.memory_space<vmem>>, vector<1x1x8x128xf32>
      %21 = vector.shape_cast %20 : vector<1x1x8x128xf32> to vector<8x128xf32>
      %c0_10 = arith.constant 0 : index
      %c1 = arith.constant 1 : index
      %22 = arith.index_cast %18 : i32 to index
      %c0_11 = arith.constant 0 : index
      %23 = vector.load %arg3[%c0_10, %c1, %22, %c0_11] : memref<1x4x16x128xf32, #tpu.memory_space<vmem>>, vector<1x1x8x128xf32>
      %24 = vector.shape_cast %23 : vector<1x1x8x128xf32> to vector<8x128xf32>
      %c0_12 = arith.constant 0 : index
      %c2 = arith.constant 2 : index
      %25 = arith.index_cast %18 : i32 to index
      %c0_13 = arith.constant 0 : index
      %26 = vector.load %arg3[%c0_12, %c2, %25, %c0_13] : memref<1x4x16x128xf32, #tpu.memory_space<vmem>>, vector<1x1x8x128xf32>
      %27 = vector.shape_cast %26 : vector<1x1x8x128xf32> to vector<8x128xf32>
      %c0_14 = arith.constant 0 : index
      %c3 = arith.constant 3 : index
      %28 = arith.index_cast %18 : i32 to index
      %c0_15 = arith.constant 0 : index
      %29 = vector.load %arg3[%c0_14, %c3, %28, %c0_15] : memref<1x4x16x128xf32, #tpu.memory_space<vmem>>, vector<1x1x8x128xf32>
      %30 = vector.shape_cast %29 : vector<1x1x8x128xf32> to vector<8x128xf32>
      %c0_16 = arith.constant 0 : index
      %c0_17 = arith.constant 0 : index
      %31 = arith.index_cast %18 : i32 to index
      %c0_18 = arith.constant 0 : index
      %32 = vector.load %arg4[%c0_16, %c0_17, %31, %c0_18] : memref<1x1x16x128xi32, #tpu.memory_space<vmem>>, vector<1x1x8x128xi32>
      %33 = vector.shape_cast %32 : vector<1x1x8x128xi32> to vector<8x128xi32>
      %34 = arith.maximumf %21, %24 : vector<8x128xf32>
      %35 = arith.maximumf %34, %27 : vector<8x128xf32>
      %36 = arith.maximumf %35, %30 : vector<8x128xf32>
      %37 = arith.subf %21, %36 : vector<8x128xf32>
      %38 = math.exp %37 : vector<8x128xf32>
      %39 = arith.subf %24, %36 : vector<8x128xf32>
      %40 = math.exp %39 : vector<8x128xf32>
      %41 = arith.subf %27, %36 : vector<8x128xf32>
      %42 = math.exp %41 : vector<8x128xf32>
      %43 = arith.subf %30, %36 : vector<8x128xf32>
      %44 = math.exp %43 : vector<8x128xf32>
      %45 = arith.addf %38, %40 : vector<8x128xf32>
      %46 = arith.addf %45, %42 : vector<8x128xf32>
      %47 = arith.addf %46, %44 : vector<8x128xf32>
      %48 = tpu.reciprocal %47 {approx = true} : vector<8x128xf32> -> vector<8x128xf32>
      %49 = arith.mulf %38, %48 : vector<8x128xf32>
      %c0_i32_19 = arith.constant 0 : i32
      %50 = vector.broadcast %c0_i32_19 : i32 to vector<8x128xi32>
      %51 = arith.cmpi eq, %33, %50 : vector<8x128xi32>
      %52 = arith.extui %51 : vector<8x128xi1> to vector<8x128xi32>
      %53 = arith.sitofp %52 : vector<8x128xi32> to vector<8x128xf32>
      %54 = arith.mulf %49, %53 : vector<8x128xf32>
      %55 = arith.addf %49, %53 : vector<8x128xf32>
      %56 = arith.mulf %40, %48 : vector<8x128xf32>
      %c1_i32_20 = arith.constant 1 : i32
      %57 = vector.broadcast %c1_i32_20 : i32 to vector<8x128xi32>
      %58 = arith.cmpi eq, %33, %57 : vector<8x128xi32>
      %59 = arith.extui %58 : vector<8x128xi1> to vector<8x128xi32>
      %60 = arith.sitofp %59 : vector<8x128xi32> to vector<8x128xf32>
      %61 = arith.mulf %56, %60 : vector<8x128xf32>
      %62 = arith.addf %56, %60 : vector<8x128xf32>
      %63 = arith.mulf %42, %48 : vector<8x128xf32>
      %c2_i32 = arith.constant 2 : i32
      %64 = vector.broadcast %c2_i32 : i32 to vector<8x128xi32>
      %65 = arith.cmpi eq, %33, %64 : vector<8x128xi32>
      %66 = arith.extui %65 : vector<8x128xi1> to vector<8x128xi32>
      %67 = arith.sitofp %66 : vector<8x128xi32> to vector<8x128xf32>
      %68 = arith.mulf %63, %67 : vector<8x128xf32>
      %69 = arith.addf %63, %67 : vector<8x128xf32>
      %70 = arith.mulf %44, %48 : vector<8x128xf32>
      %c3_i32 = arith.constant 3 : i32
      %71 = vector.broadcast %c3_i32 : i32 to vector<8x128xi32>
      %72 = arith.cmpi eq, %33, %71 : vector<8x128xi32>
      %73 = arith.extui %72 : vector<8x128xi1> to vector<8x128xi32>
      %74 = arith.sitofp %73 : vector<8x128xi32> to vector<8x128xf32>
      %75 = arith.mulf %70, %74 : vector<8x128xf32>
      %76 = arith.addf %70, %74 : vector<8x128xf32>
      %77 = arith.addf %13, %54 : vector<8x128xf32>
      %78 = arith.addf %14, %61 : vector<8x128xf32>
      %79 = arith.addf %15, %68 : vector<8x128xf32>
      %80 = arith.addf %16, %75 : vector<8x128xf32>
      %81 = arith.addf %13, %55 : vector<8x128xf32>
      %82 = arith.addf %14, %62 : vector<8x128xf32>
      %83 = arith.addf %15, %69 : vector<8x128xf32>
      %84 = arith.addf %16, %76 : vector<8x128xf32>
      %c1_i32_21 = arith.constant 1 : i32
      %c8_i32_22 = arith.constant 8 : i32
      %85 = arith.muli %c1_i32_21, %c8_i32_22 : i32
      %86 = tpu.assume_multiple %85, 8 : i32
      %c0_23 = arith.constant 0 : index
      %c0_24 = arith.constant 0 : index
      %87 = arith.index_cast %86 : i32 to index
      %c0_25 = arith.constant 0 : index
      %88 = vector.load %arg3[%c0_23, %c0_24, %87, %c0_25] : memref<1x4x16x128xf32, #tpu.memory_space<vmem>>, vector<1x1x8x128xf32>
      %89 = vector.shape_cast %88 : vector<1x1x8x128xf32> to vector<8x128xf32>
      %c0_26 = arith.constant 0 : index
      %c1_27 = arith.constant 1 : index
      %90 = arith.index_cast %86 : i32 to index
      %c0_28 = arith.constant 0 : index
      %91 = vector.load %arg3[%c0_26, %c1_27, %90, %c0_28] : memref<1x4x16x128xf32, #tpu.memory_space<vmem>>, vector<1x1x8x128xf32>
      %92 = vector.shape_cast %91 : vector<1x1x8x128xf32> to vector<8x128xf32>
      %c0_29 = arith.constant 0 : index
      %c2_30 = arith.constant 2 : index
      %93 = arith.index_cast %86 : i32 to index
      %c0_31 = arith.constant 0 : index
      %94 = vector.load %arg3[%c0_29, %c2_30, %93, %c0_31] : memref<1x4x16x128xf32, #tpu.memory_space<vmem>>, vector<1x1x8x128xf32>
      %95 = vector.shape_cast %94 : vector<1x1x8x128xf32> to vector<8x128xf32>
      %c0_32 = arith.constant 0 : index
      %c3_33 = arith.constant 3 : index
      %96 = arith.index_cast %86 : i32 to index
      %c0_34 = arith.constant 0 : index
      %97 = vector.load %arg3[%c0_32, %c3_33, %96, %c0_34] : memref<1x4x16x128xf32, #tpu.memory_space<vmem>>, vector<1x1x8x128xf32>
      %98 = vector.shape_cast %97 : vector<1x1x8x128xf32> to vector<8x128xf32>
      %c0_35 = arith.constant 0 : index
      %c0_36 = arith.constant 0 : index
      %99 = arith.index_cast %86 : i32 to index
      %c0_37 = arith.constant 0 : index
      %100 = vector.load %arg4[%c0_35, %c0_36, %99, %c0_37] : memref<1x1x16x128xi32, #tpu.memory_space<vmem>>, vector<1x1x8x128xi32>
      %101 = vector.shape_cast %100 : vector<1x1x8x128xi32> to vector<8x128xi32>
      %102 = arith.maximumf %89, %92 : vector<8x128xf32>
      %103 = arith.maximumf %102, %95 : vector<8x128xf32>
      %104 = arith.maximumf %103, %98 : vector<8x128xf32>
      %105 = arith.subf %89, %104 : vector<8x128xf32>
      %106 = math.exp %105 : vector<8x128xf32>
      %107 = arith.subf %92, %104 : vector<8x128xf32>
      %108 = math.exp %107 : vector<8x128xf32>
      %109 = arith.subf %95, %104 : vector<8x128xf32>
      %110 = math.exp %109 : vector<8x128xf32>
      %111 = arith.subf %98, %104 : vector<8x128xf32>
      %112 = math.exp %111 : vector<8x128xf32>
      %113 = arith.addf %106, %108 : vector<8x128xf32>
      %114 = arith.addf %113, %110 : vector<8x128xf32>
      %115 = arith.addf %114, %112 : vector<8x128xf32>
      %116 = tpu.reciprocal %115 {approx = true} : vector<8x128xf32> -> vector<8x128xf32>
      %117 = arith.mulf %106, %116 : vector<8x128xf32>
      %c0_i32_38 = arith.constant 0 : i32
      %118 = vector.broadcast %c0_i32_38 : i32 to vector<8x128xi32>
      %119 = arith.cmpi eq, %101, %118 : vector<8x128xi32>
      %120 = arith.extui %119 : vector<8x128xi1> to vector<8x128xi32>
      %121 = arith.sitofp %120 : vector<8x128xi32> to vector<8x128xf32>
      %122 = arith.mulf %117, %121 : vector<8x128xf32>
      %123 = arith.addf %117, %121 : vector<8x128xf32>
      %124 = arith.mulf %108, %116 : vector<8x128xf32>
      %c1_i32_39 = arith.constant 1 : i32
      %125 = vector.broadcast %c1_i32_39 : i32 to vector<8x128xi32>
      %126 = arith.cmpi eq, %101, %125 : vector<8x128xi32>
      %127 = arith.extui %126 : vector<8x128xi1> to vector<8x128xi32>
      %128 = arith.sitofp %127 : vector<8x128xi32> to vector<8x128xf32>
      %129 = arith.mulf %124, %128 : vector<8x128xf32>
      %130 = arith.addf %124, %128 : vector<8x128xf32>
      %131 = arith.mulf %110, %116 : vector<8x128xf32>
      %c2_i32_40 = arith.constant 2 : i32
      %132 = vector.broadcast %c2_i32_40 : i32 to vector<8x128xi32>
      %133 = arith.cmpi eq, %101, %132 : vector<8x128xi32>
      %134 = arith.extui %133 : vector<8x128xi1> to vector<8x128xi32>
      %135 = arith.sitofp %134 : vector<8x128xi32> to vector<8x128xf32>
      %136 = arith.mulf %131, %135 : vector<8x128xf32>
      %137 = arith.addf %131, %135 : vector<8x128xf32>
      %138 = arith.mulf %112, %116 : vector<8x128xf32>
      %c3_i32_41 = arith.constant 3 : i32
      %139 = vector.broadcast %c3_i32_41 : i32 to vector<8x128xi32>
      %140 = arith.cmpi eq, %101, %139 : vector<8x128xi32>
      %141 = arith.extui %140 : vector<8x128xi1> to vector<8x128xi32>
      %142 = arith.sitofp %141 : vector<8x128xi32> to vector<8x128xf32>
      %143 = arith.mulf %138, %142 : vector<8x128xf32>
      %144 = arith.addf %138, %142 : vector<8x128xf32>
      %145 = arith.addf %77, %122 : vector<8x128xf32>
      %146 = arith.addf %78, %129 : vector<8x128xf32>
      %147 = arith.addf %79, %136 : vector<8x128xf32>
      %148 = arith.addf %80, %143 : vector<8x128xf32>
      %149 = arith.addf %81, %123 : vector<8x128xf32>
      %150 = arith.addf %82, %130 : vector<8x128xf32>
      %151 = arith.addf %83, %137 : vector<8x128xf32>
      %152 = arith.addf %84, %144 : vector<8x128xf32>
      %c2_i32_42 = arith.constant 2 : i32
      %c0_43 = arith.constant 0 : index
      %c0_44 = arith.constant 0 : index
      %c0_45 = arith.constant 0 : index
      %c0_46 = arith.constant 0 : index
      %153 = vector.load %arg5[%c0_43, %c0_44, %c0_45, %c0_46] : memref<1x4x8x128xf32, #tpu.memory_space<vmem>>, vector<1x1x8x128xf32>
      %154 = vector.shape_cast %153 : vector<1x1x8x128xf32> to vector<8x128xf32>
      %155 = arith.addf %154, %145 : vector<8x128xf32>
      %c0_47 = arith.constant 0 : index
      %c0_48 = arith.constant 0 : index
      %c0_49 = arith.constant 0 : index
      %c0_50 = arith.constant 0 : index
      %156 = vector.load %arg5[%c0_47, %c0_48, %c0_49, %c0_50] : memref<1x4x8x128xf32, #tpu.memory_space<vmem>>, vector<1x1x8x128xf32>
      %157 = vector.shape_cast %156 : vector<1x1x8x128xf32> to vector<8x128xf32>
      %158 = vector.shape_cast %155 : vector<8x128xf32> to vector<1x1x8x128xf32>
      tpu.vector_store %arg5[%c0_47, %c0_48, %c0_49, %c0_50], %158 {strides = array<i32>} : memref<1x4x8x128xf32, #tpu.memory_space<vmem>>, vector<1x1x8x128xf32>,
      %c0_51 = arith.constant 0 : index
      %c0_52 = arith.constant 0 : index
      %c0_53 = arith.constant 0 : index
      %c0_54 = arith.constant 0 : index
      %159 = vector.load %arg6[%c0_51, %c0_52, %c0_53, %c0_54] : memref<1x4x8x128xf32, #tpu.memory_space<vmem>>, vector<1x1x8x128xf32>
      %160 = vector.shape_cast %159 : vector<1x1x8x128xf32> to vector<8x128xf32>
      %161 = arith.addf %160, %149 : vector<8x128xf32>
      %c0_55 = arith.constant 0 : index
      %c0_56 = arith.constant 0 : index
      %c0_57 = arith.constant 0 : index
      %c0_58 = arith.constant 0 : index
      %162 = vector.load %arg6[%c0_55, %c0_56, %c0_57, %c0_58] : memref<1x4x8x128xf32, #tpu.memory_space<vmem>>, vector<1x1x8x128xf32>
      %163 = vector.shape_cast %162 : vector<1x1x8x128xf32> to vector<8x128xf32>
      %164 = vector.shape_cast %161 : vector<8x128xf32> to vector<1x1x8x128xf32>
      tpu.vector_store %arg6[%c0_55, %c0_56, %c0_57, %c0_58], %164 {strides = array<i32>} : memref<1x4x8x128xf32, #tpu.memory_space<vmem>>, vector<1x1x8x128xf32>,
      %c0_59 = arith.constant 0 : index
      %c1_60 = arith.constant 1 : index
      %c0_61 = arith.constant 0 : index
      %c0_62 = arith.constant 0 : index
      %165 = vector.load %arg5[%c0_59, %c1_60, %c0_61, %c0_62] : memref<1x4x8x128xf32, #tpu.memory_space<vmem>>, vector<1x1x8x128xf32>
      %166 = vector.shape_cast %165 : vector<1x1x8x128xf32> to vector<8x128xf32>
      %167 = arith.addf %166, %146 : vector<8x128xf32>
      %c0_63 = arith.constant 0 : index
      %c1_64 = arith.constant 1 : index
      %c0_65 = arith.constant 0 : index
      %c0_66 = arith.constant 0 : index
      %168 = vector.load %arg5[%c0_63, %c1_64, %c0_65, %c0_66] : memref<1x4x8x128xf32, #tpu.memory_space<vmem>>, vector<1x1x8x128xf32>
      %169 = vector.shape_cast %168 : vector<1x1x8x128xf32> to vector<8x128xf32>
      %170 = vector.shape_cast %167 : vector<8x128xf32> to vector<1x1x8x128xf32>
      tpu.vector_store %arg5[%c0_63, %c1_64, %c0_65, %c0_66], %170 {strides = array<i32>} : memref<1x4x8x128xf32, #tpu.memory_space<vmem>>, vector<1x1x8x128xf32>,
      %c0_67 = arith.constant 0 : index
      %c1_68 = arith.constant 1 : index
      %c0_69 = arith.constant 0 : index
      %c0_70 = arith.constant 0 : index
      %171 = vector.load %arg6[%c0_67, %c1_68, %c0_69, %c0_70] : memref<1x4x8x128xf32, #tpu.memory_space<vmem>>, vector<1x1x8x128xf32>
      %172 = vector.shape_cast %171 : vector<1x1x8x128xf32> to vector<8x128xf32>
      %173 = arith.addf %172, %150 : vector<8x128xf32>
      %c0_71 = arith.constant 0 : index
      %c1_72 = arith.constant 1 : index
      %c0_73 = arith.constant 0 : index
      %c0_74 = arith.constant 0 : index
      %174 = vector.load %arg6[%c0_71, %c1_72, %c0_73, %c0_74] : memref<1x4x8x128xf32, #tpu.memory_space<vmem>>, vector<1x1x8x128xf32>
      %175 = vector.shape_cast %174 : vector<1x1x8x128xf32> to vector<8x128xf32>
      %176 = vector.shape_cast %173 : vector<8x128xf32> to vector<1x1x8x128xf32>
      tpu.vector_store %arg6[%c0_71, %c1_72, %c0_73, %c0_74], %176 {strides = array<i32>} : memref<1x4x8x128xf32, #tpu.memory_space<vmem>>, vector<1x1x8x128xf32>,
      %c0_75 = arith.constant 0 : index
      %c2_76 = arith.constant 2 : index
      %c0_77 = arith.constant 0 : index
      %c0_78 = arith.constant 0 : index
      %177 = vector.load %arg5[%c0_75, %c2_76, %c0_77, %c0_78] : memref<1x4x8x128xf32, #tpu.memory_space<vmem>>, vector<1x1x8x128xf32>
      %178 = vector.shape_cast %177 : vector<1x1x8x128xf32> to vector<8x128xf32>
      %179 = arith.addf %178, %147 : vector<8x128xf32>
      %c0_79 = arith.constant 0 : index
      %c2_80 = arith.constant 2 : index
      %c0_81 = arith.constant 0 : index
      %c0_82 = arith.constant 0 : index
      %180 = vector.load %arg5[%c0_79, %c2_80, %c0_81, %c0_82] : memref<1x4x8x128xf32, #tpu.memory_space<vmem>>, vector<1x1x8x128xf32>
      %181 = vector.shape_cast %180 : vector<1x1x8x128xf32> to vector<8x128xf32>
      %182 = vector.shape_cast %179 : vector<8x128xf32> to vector<1x1x8x128xf32>
      tpu.vector_store %arg5[%c0_79, %c2_80, %c0_81, %c0_82], %182 {strides = array<i32>} : memref<1x4x8x128xf32, #tpu.memory_space<vmem>>, vector<1x1x8x128xf32>,
      %c0_83 = arith.constant 0 : index
      %c2_84 = arith.constant 2 : index
      %c0_85 = arith.constant 0 : index
      %c0_86 = arith.constant 0 : index
      %183 = vector.load %arg6[%c0_83, %c2_84, %c0_85, %c0_86] : memref<1x4x8x128xf32, #tpu.memory_space<vmem>>, vector<1x1x8x128xf32>
      %184 = vector.shape_cast %183 : vector<1x1x8x128xf32> to vector<8x128xf32>
      %185 = arith.addf %184, %151 : vector<8x128xf32>
      %c0_87 = arith.constant 0 : index
      %c2_88 = arith.constant 2 : index
      %c0_89 = arith.constant 0 : index
      %c0_90 = arith.constant 0 : index
      %186 = vector.load %arg6[%c0_87, %c2_88, %c0_89, %c0_90] : memref<1x4x8x128xf32, #tpu.memory_space<vmem>>, vector<1x1x8x128xf32>
      %187 = vector.shape_cast %186 : vector<1x1x8x128xf32> to vector<8x128xf32>
      %188 = vector.shape_cast %185 : vector<8x128xf32> to vector<1x1x8x128xf32>
      tpu.vector_store %arg6[%c0_87, %c2_88, %c0_89, %c0_90], %188 {strides = array<i32>} : memref<1x4x8x128xf32, #tpu.memory_space<vmem>>, vector<1x1x8x128xf32>,
      %c0_91 = arith.constant 0 : index
      %c3_92 = arith.constant 3 : index
      %c0_93 = arith.constant 0 : index
      %c0_94 = arith.constant 0 : index
      %189 = vector.load %arg5[%c0_91, %c3_92, %c0_93, %c0_94] : memref<1x4x8x128xf32, #tpu.memory_space<vmem>>, vector<1x1x8x128xf32>
      %190 = vector.shape_cast %189 : vector<1x1x8x128xf32> to vector<8x128xf32>
      %191 = arith.addf %190, %148 : vector<8x128xf32>
      %c0_95 = arith.constant 0 : index
      %c3_96 = arith.constant 3 : index
      %c0_97 = arith.constant 0 : index
      %c0_98 = arith.constant 0 : index
      %192 = vector.load %arg5[%c0_95, %c3_96, %c0_97, %c0_98] : memref<1x4x8x128xf32, #tpu.memory_space<vmem>>, vector<1x1x8x128xf32>
      %193 = vector.shape_cast %192 : vector<1x1x8x128xf32> to vector<8x128xf32>
      %194 = vector.shape_cast %191 : vector<8x128xf32> to vector<1x1x8x128xf32>
      tpu.vector_store %arg5[%c0_95, %c3_96, %c0_97, %c0_98], %194 {strides = array<i32>} : memref<1x4x8x128xf32, #tpu.memory_space<vmem>>, vector<1x1x8x128xf32>,
      %c0_99 = arith.constant 0 : index
      %c3_100 = arith.constant 3 : index
      %c0_101 = arith.constant 0 : index
      %c0_102 = arith.constant 0 : index
      %195 = vector.load %arg6[%c0_99, %c3_100, %c0_101, %c0_102] : memref<1x4x8x128xf32, #tpu.memory_space<vmem>>, vector<1x1x8x128xf32>
      %196 = vector.shape_cast %195 : vector<1x1x8x128xf32> to vector<8x128xf32>
      %197 = arith.addf %196, %152 : vector<8x128xf32>
      %c0_103 = arith.constant 0 : index
      %c3_104 = arith.constant 3 : index
      %c0_105 = arith.constant 0 : index
      %c0_106 = arith.constant 0 : index
      %198 = vector.load %arg6[%c0_103, %c3_104, %c0_105, %c0_106] : memref<1x4x8x128xf32, #tpu.memory_space<vmem>>, vector<1x1x8x128xf32>
      %199 = vector.shape_cast %198 : vector<1x1x8x128xf32> to vector<8x128xf32>
      %200 = vector.shape_cast %197 : vector<8x128xf32> to vector<1x1x8x128xf32>
      tpu.vector_store %arg6[%c0_103, %c3_104, %c0_105, %c0_106], %200 {strides = array<i32>} : memref<1x4x8x128xf32, #tpu.memory_space<vmem>>, vector<1x1x8x128xf32>,
    } else {
    }
    %true = arith.constant true
    %10 = arith.xori %7, %true : i1
    %11 = arith.extui %10 : i1 to i32
    %c0_i32_3 = arith.constant 0 : i32
    %12 = arith.cmpi ne, %11, %c0_i32_3 : i32
    scf.if %12 {
      %cst = arith.constant 0.000000e+00 : f32
      %13 = vector.broadcast %cst : f32 to vector<8x128xf32>
      %cst_4 = arith.constant 0.000000e+00 : f32
      %14 = vector.broadcast %cst_4 : f32 to vector<8x128xf32>
      %cst_5 = arith.constant 0.000000e+00 : f32
      %15 = vector.broadcast %cst_5 : f32 to vector<8x128xf32>
      %cst_6 = arith.constant 0.000000e+00 : f32
      %16 = vector.broadcast %cst_6 : f32 to vector<8x128xf32>
      %c0_i32_7 = arith.constant 0 : i32
      %c8_i32 = arith.constant 8 : i32
      %17 = arith.muli %c0_i32_7, %c8_i32 : i32
      %18 = tpu.assume_multiple %17, 8 : i32
      %c0 = arith.constant 0 : index
      %c0_8 = arith.constant 0 : index
      %19 = arith.index_cast %18 : i32 to index
      %c0_9 = arith.constant 0 : index
      %20 = vector.load %arg3[%c0, %c0_8, %19, %c0_9] : memref<1x4x16x128xf32, #tpu.memory_space<vmem>>, vector<1x1x8x128xf32>
      %21 = vector.shape_cast %20 : vector<1x1x8x128xf32> to vector<8x128xf32>
      %c0_10 = arith.constant 0 : index
      %c1 = arith.constant 1 : index
      %22 = arith.index_cast %18 : i32 to index
      %c0_11 = arith.constant 0 : index
      %23 = vector.load %arg3[%c0_10, %c1, %22, %c0_11] : memref<1x4x16x128xf32, #tpu.memory_space<vmem>>, vector<1x1x8x128xf32>
      %24 = vector.shape_cast %23 : vector<1x1x8x128xf32> to vector<8x128xf32>
      %c0_12 = arith.constant 0 : index
      %c2 = arith.constant 2 : index
      %25 = arith.index_cast %18 : i32 to index
      %c0_13 = arith.constant 0 : index
      %26 = vector.load %arg3[%c0_12, %c2, %25, %c0_13] : memref<1x4x16x128xf32, #tpu.memory_space<vmem>>, vector<1x1x8x128xf32>
      %27 = vector.shape_cast %26 : vector<1x1x8x128xf32> to vector<8x128xf32>
      %c0_14 = arith.constant 0 : index
      %c3 = arith.constant 3 : index
      %28 = arith.index_cast %18 : i32 to index
      %c0_15 = arith.constant 0 : index
      %29 = vector.load %arg3[%c0_14, %c3, %28, %c0_15] : memref<1x4x16x128xf32, #tpu.memory_space<vmem>>, vector<1x1x8x128xf32>
      %30 = vector.shape_cast %29 : vector<1x1x8x128xf32> to vector<8x128xf32>
      %c0_16 = arith.constant 0 : index
      %c0_17 = arith.constant 0 : index
      %31 = arith.index_cast %18 : i32 to index
      %c0_18 = arith.constant 0 : index
      %32 = vector.load %arg4[%c0_16, %c0_17, %31, %c0_18] : memref<1x1x16x128xi32, #tpu.memory_space<vmem>>, vector<1x1x8x128xi32>
      %33 = vector.shape_cast %32 : vector<1x1x8x128xi32> to vector<8x128xi32>
      %34 = arith.maximumf %21, %24 : vector<8x128xf32>
      %35 = arith.maximumf %34, %27 : vector<8x128xf32>
      %36 = arith.maximumf %35, %30 : vector<8x128xf32>
      %37 = arith.subf %21, %36 : vector<8x128xf32>
      %38 = math.exp %37 : vector<8x128xf32>
      %39 = arith.subf %24, %36 : vector<8x128xf32>
      %40 = math.exp %39 : vector<8x128xf32>
      %41 = arith.subf %27, %36 : vector<8x128xf32>
      %42 = math.exp %41 : vector<8x128xf32>
      %43 = arith.subf %30, %36 : vector<8x128xf32>
      %44 = math.exp %43 : vector<8x128xf32>
      %45 = arith.addf %38, %40 : vector<8x128xf32>
      %46 = arith.addf %45, %42 : vector<8x128xf32>
      %47 = arith.addf %46, %44 : vector<8x128xf32>
      %48 = tpu.reciprocal %47 {approx = true} : vector<8x128xf32> -> vector<8x128xf32>
      %49 = tpu.iota {dimensions = array<i32: 0>} : vector<8x128xi32>
      %50 = tpu.iota {dimensions = array<i32: 1>} : vector<8x128xi32>
      %c128_i32 = arith.constant 128 : i32
      %51 = arith.muli %18, %c128_i32 : i32
      %52 = arith.addi %5, %51 : i32
      %c128_i32_19 = arith.constant 128 : i32
      %53 = vector.broadcast %c128_i32_19 : i32 to vector<8x128xi32>
      %54 = arith.muli %49, %53 : vector<8x128xi32>
      %55 = vector.broadcast %52 : i32 to vector<8x128xi32>
      %56 = arith.addi %55, %54 : vector<8x128xi32>
      %57 = arith.addi %56, %50 : vector<8x128xi32>
      %c1280_i32_20 = arith.constant 1280 : i32
      %58 = vector.broadcast %c1280_i32_20 : i32 to vector<8x128xi32>
      %59 = arith.cmpi slt, %57, %58 : vector<8x128xi32>
      %60 = arith.mulf %38, %48 : vector<8x128xf32>
      %c0_i32_21 = arith.constant 0 : i32
      %61 = vector.broadcast %c0_i32_21 : i32 to vector<8x128xi32>
      %62 = arith.cmpi eq, %33, %61 : vector<8x128xi32>
      %63 = arith.extui %62 : vector<8x128xi1> to vector<8x128xi32>
      %64 = arith.sitofp %63 : vector<8x128xi32> to vector<8x128xf32>
      %65 = arith.mulf %60, %64 : vector<8x128xf32>
      %66 = arith.addf %60, %64 : vector<8x128xf32>
      %cst_22 = arith.constant 0.000000e+00 : f32
      %67 = vector.broadcast %cst_22 : f32 to vector<8x128xf32>
      %68 = arith.select %59, %65, %67 : vector<8x128xi1>, vector<8x128xf32>
      %cst_23 = arith.constant 0.000000e+00 : f32
      %69 = vector.broadcast %cst_23 : f32 to vector<8x128xf32>
      %70 = arith.select %59, %66, %69 : vector<8x128xi1>, vector<8x128xf32>
      %71 = arith.mulf %40, %48 : vector<8x128xf32>
      %c1_i32_24 = arith.constant 1 : i32
      %72 = vector.broadcast %c1_i32_24 : i32 to vector<8x128xi32>
      %73 = arith.cmpi eq, %33, %72 : vector<8x128xi32>
      %74 = arith.extui %73 : vector<8x128xi1> to vector<8x128xi32>
      %75 = arith.sitofp %74 : vector<8x128xi32> to vector<8x128xf32>
      %76 = arith.mulf %71, %75 : vector<8x128xf32>
      %77 = arith.addf %71, %75 : vector<8x128xf32>
      %cst_25 = arith.constant 0.000000e+00 : f32
      %78 = vector.broadcast %cst_25 : f32 to vector<8x128xf32>
      %79 = arith.select %59, %76, %78 : vector<8x128xi1>, vector<8x128xf32>
      %cst_26 = arith.constant 0.000000e+00 : f32
      %80 = vector.broadcast %cst_26 : f32 to vector<8x128xf32>
      %81 = arith.select %59, %77, %80 : vector<8x128xi1>, vector<8x128xf32>
      %82 = arith.mulf %42, %48 : vector<8x128xf32>
      %c2_i32 = arith.constant 2 : i32
      %83 = vector.broadcast %c2_i32 : i32 to vector<8x128xi32>
      %84 = arith.cmpi eq, %33, %83 : vector<8x128xi32>
      %85 = arith.extui %84 : vector<8x128xi1> to vector<8x128xi32>
      %86 = arith.sitofp %85 : vector<8x128xi32> to vector<8x128xf32>
      %87 = arith.mulf %82, %86 : vector<8x128xf32>
      %88 = arith.addf %82, %86 : vector<8x128xf32>
      %cst_27 = arith.constant 0.000000e+00 : f32
      %89 = vector.broadcast %cst_27 : f32 to vector<8x128xf32>
      %90 = arith.select %59, %87, %89 : vector<8x128xi1>, vector<8x128xf32>
      %cst_28 = arith.constant 0.000000e+00 : f32
      %91 = vector.broadcast %cst_28 : f32 to vector<8x128xf32>
      %92 = arith.select %59, %88, %91 : vector<8x128xi1>, vector<8x128xf32>
      %93 = arith.mulf %44, %48 : vector<8x128xf32>
      %c3_i32 = arith.constant 3 : i32
      %94 = vector.broadcast %c3_i32 : i32 to vector<8x128xi32>
      %95 = arith.cmpi eq, %33, %94 : vector<8x128xi32>
      %96 = arith.extui %95 : vector<8x128xi1> to vector<8x128xi32>
      %97 = arith.sitofp %96 : vector<8x128xi32> to vector<8x128xf32>
      %98 = arith.mulf %93, %97 : vector<8x128xf32>
      %99 = arith.addf %93, %97 : vector<8x128xf32>
      %cst_29 = arith.constant 0.000000e+00 : f32
      %100 = vector.broadcast %cst_29 : f32 to vector<8x128xf32>
      %101 = arith.select %59, %98, %100 : vector<8x128xi1>, vector<8x128xf32>
      %cst_30 = arith.constant 0.000000e+00 : f32
      %102 = vector.broadcast %cst_30 : f32 to vector<8x128xf32>
      %103 = arith.select %59, %99, %102 : vector<8x128xi1>, vector<8x128xf32>
      %104 = arith.addf %13, %68 : vector<8x128xf32>
      %105 = arith.addf %14, %79 : vector<8x128xf32>
      %106 = arith.addf %15, %90 : vector<8x128xf32>
      %107 = arith.addf %16, %101 : vector<8x128xf32>
      %108 = arith.addf %13, %70 : vector<8x128xf32>
      %109 = arith.addf %14, %81 : vector<8x128xf32>
      %110 = arith.addf %15, %92 : vector<8x128xf32>
      %111 = arith.addf %16, %103 : vector<8x128xf32>
      %c1_i32_31 = arith.constant 1 : i32
      %c8_i32_32 = arith.constant 8 : i32
      %112 = arith.muli %c1_i32_31, %c8_i32_32 : i32
      %113 = tpu.assume_multiple %112, 8 : i32
      %c0_33 = arith.constant 0 : index
      %c0_34 = arith.constant 0 : index
      %114 = arith.index_cast %113 : i32 to index
      %c0_35 = arith.constant 0 : index
      %115 = vector.load %arg3[%c0_33, %c0_34, %114, %c0_35] : memref<1x4x16x128xf32, #tpu.memory_space<vmem>>, vector<1x1x8x128xf32>
      %116 = vector.shape_cast %115 : vector<1x1x8x128xf32> to vector<8x128xf32>
      %c0_36 = arith.constant 0 : index
      %c1_37 = arith.constant 1 : index
      %117 = arith.index_cast %113 : i32 to index
      %c0_38 = arith.constant 0 : index
      %118 = vector.load %arg3[%c0_36, %c1_37, %117, %c0_38] : memref<1x4x16x128xf32, #tpu.memory_space<vmem>>, vector<1x1x8x128xf32>
      %119 = vector.shape_cast %118 : vector<1x1x8x128xf32> to vector<8x128xf32>
      %c0_39 = arith.constant 0 : index
      %c2_40 = arith.constant 2 : index
      %120 = arith.index_cast %113 : i32 to index
      %c0_41 = arith.constant 0 : index
      %121 = vector.load %arg3[%c0_39, %c2_40, %120, %c0_41] : memref<1x4x16x128xf32, #tpu.memory_space<vmem>>, vector<1x1x8x128xf32>
      %122 = vector.shape_cast %121 : vector<1x1x8x128xf32> to vector<8x128xf32>
      %c0_42 = arith.constant 0 : index
      %c3_43 = arith.constant 3 : index
      %123 = arith.index_cast %113 : i32 to index
      %c0_44 = arith.constant 0 : index
      %124 = vector.load %arg3[%c0_42, %c3_43, %123, %c0_44] : memref<1x4x16x128xf32, #tpu.memory_space<vmem>>, vector<1x1x8x128xf32>
      %125 = vector.shape_cast %124 : vector<1x1x8x128xf32> to vector<8x128xf32>
      %c0_45 = arith.constant 0 : index
      %c0_46 = arith.constant 0 : index
      %126 = arith.index_cast %113 : i32 to index
      %c0_47 = arith.constant 0 : index
      %127 = vector.load %arg4[%c0_45, %c0_46, %126, %c0_47] : memref<1x1x16x128xi32, #tpu.memory_space<vmem>>, vector<1x1x8x128xi32>
      %128 = vector.shape_cast %127 : vector<1x1x8x128xi32> to vector<8x128xi32>
      %129 = arith.maximumf %116, %119 : vector<8x128xf32>
      %130 = arith.maximumf %129, %122 : vector<8x128xf32>
      %131 = arith.maximumf %130, %125 : vector<8x128xf32>
      %132 = arith.subf %116, %131 : vector<8x128xf32>
      %133 = math.exp %132 : vector<8x128xf32>
      %134 = arith.subf %119, %131 : vector<8x128xf32>
      %135 = math.exp %134 : vector<8x128xf32>
      %136 = arith.subf %122, %131 : vector<8x128xf32>
      %137 = math.exp %136 : vector<8x128xf32>
      %138 = arith.subf %125, %131 : vector<8x128xf32>
      %139 = math.exp %138 : vector<8x128xf32>
      %140 = arith.addf %133, %135 : vector<8x128xf32>
      %141 = arith.addf %140, %137 : vector<8x128xf32>
      %142 = arith.addf %141, %139 : vector<8x128xf32>
      %143 = tpu.reciprocal %142 {approx = true} : vector<8x128xf32> -> vector<8x128xf32>
      %144 = tpu.iota {dimensions = array<i32: 0>} : vector<8x128xi32>
      %145 = tpu.iota {dimensions = array<i32: 1>} : vector<8x128xi32>
      %c128_i32_48 = arith.constant 128 : i32
      %146 = arith.muli %113, %c128_i32_48 : i32
      %147 = arith.addi %5, %146 : i32
      %c128_i32_49 = arith.constant 128 : i32
      %148 = vector.broadcast %c128_i32_49 : i32 to vector<8x128xi32>
      %149 = arith.muli %144, %148 : vector<8x128xi32>
      %150 = vector.broadcast %147 : i32 to vector<8x128xi32>
      %151 = arith.addi %150, %149 : vector<8x128xi32>
      %152 = arith.addi %151, %145 : vector<8x128xi32>
      %c1280_i32_50 = arith.constant 1280 : i32
      %153 = vector.broadcast %c1280_i32_50 : i32 to vector<8x128xi32>
      %154 = arith.cmpi slt, %152, %153 : vector<8x128xi32>
      %155 = arith.mulf %133, %143 : vector<8x128xf32>
      %c0_i32_51 = arith.constant 0 : i32
      %156 = vector.broadcast %c0_i32_51 : i32 to vector<8x128xi32>
      %157 = arith.cmpi eq, %128, %156 : vector<8x128xi32>
      %158 = arith.extui %157 : vector<8x128xi1> to vector<8x128xi32>
      %159 = arith.sitofp %158 : vector<8x128xi32> to vector<8x128xf32>
      %160 = arith.mulf %155, %159 : vector<8x128xf32>
      %161 = arith.addf %155, %159 : vector<8x128xf32>
      %cst_52 = arith.constant 0.000000e+00 : f32
      %162 = vector.broadcast %cst_52 : f32 to vector<8x128xf32>
      %163 = arith.select %154, %160, %162 : vector<8x128xi1>, vector<8x128xf32>
      %cst_53 = arith.constant 0.000000e+00 : f32
      %164 = vector.broadcast %cst_53 : f32 to vector<8x128xf32>
      %165 = arith.select %154, %161, %164 : vector<8x128xi1>, vector<8x128xf32>
      %166 = arith.mulf %135, %143 : vector<8x128xf32>
      %c1_i32_54 = arith.constant 1 : i32
      %167 = vector.broadcast %c1_i32_54 : i32 to vector<8x128xi32>
      %168 = arith.cmpi eq, %128, %167 : vector<8x128xi32>
      %169 = arith.extui %168 : vector<8x128xi1> to vector<8x128xi32>
      %170 = arith.sitofp %169 : vector<8x128xi32> to vector<8x128xf32>
      %171 = arith.mulf %166, %170 : vector<8x128xf32>
      %172 = arith.addf %166, %170 : vector<8x128xf32>
      %cst_55 = arith.constant 0.000000e+00 : f32
      %173 = vector.broadcast %cst_55 : f32 to vector<8x128xf32>
      %174 = arith.select %154, %171, %173 : vector<8x128xi1>, vector<8x128xf32>
      %cst_56 = arith.constant 0.000000e+00 : f32
      %175 = vector.broadcast %cst_56 : f32 to vector<8x128xf32>
      %176 = arith.select %154, %172, %175 : vector<8x128xi1>, vector<8x128xf32>
      %177 = arith.mulf %137, %143 : vector<8x128xf32>
      %c2_i32_57 = arith.constant 2 : i32
      %178 = vector.broadcast %c2_i32_57 : i32 to vector<8x128xi32>
      %179 = arith.cmpi eq, %128, %178 : vector<8x128xi32>
      %180 = arith.extui %179 : vector<8x128xi1> to vector<8x128xi32>
      %181 = arith.sitofp %180 : vector<8x128xi32> to vector<8x128xf32>
      %182 = arith.mulf %177, %181 : vector<8x128xf32>
      %183 = arith.addf %177, %181 : vector<8x128xf32>
      %cst_58 = arith.constant 0.000000e+00 : f32
      %184 = vector.broadcast %cst_58 : f32 to vector<8x128xf32>
      %185 = arith.select %154, %182, %184 : vector<8x128xi1>, vector<8x128xf32>
      %cst_59 = arith.constant 0.000000e+00 : f32
      %186 = vector.broadcast %cst_59 : f32 to vector<8x128xf32>
      %187 = arith.select %154, %183, %186 : vector<8x128xi1>, vector<8x128xf32>
      %188 = arith.mulf %139, %143 : vector<8x128xf32>
      %c3_i32_60 = arith.constant 3 : i32
      %189 = vector.broadcast %c3_i32_60 : i32 to vector<8x128xi32>
      %190 = arith.cmpi eq, %128, %189 : vector<8x128xi32>
      %191 = arith.extui %190 : vector<8x128xi1> to vector<8x128xi32>
      %192 = arith.sitofp %191 : vector<8x128xi32> to vector<8x128xf32>
      %193 = arith.mulf %188, %192 : vector<8x128xf32>
      %194 = arith.addf %188, %192 : vector<8x128xf32>
      %cst_61 = arith.constant 0.000000e+00 : f32
      %195 = vector.broadcast %cst_61 : f32 to vector<8x128xf32>
      %196 = arith.select %154, %193, %195 : vector<8x128xi1>, vector<8x128xf32>
      %cst_62 = arith.constant 0.000000e+00 : f32
      %197 = vector.broadcast %cst_62 : f32 to vector<8x128xf32>
      %198 = arith.select %154, %194, %197 : vector<8x128xi1>, vector<8x128xf32>
      %199 = arith.addf %104, %163 : vector<8x128xf32>
      %200 = arith.addf %105, %174 : vector<8x128xf32>
      %201 = arith.addf %106, %185 : vector<8x128xf32>
      %202 = arith.addf %107, %196 : vector<8x128xf32>
      %203 = arith.addf %108, %165 : vector<8x128xf32>
      %204 = arith.addf %109, %176 : vector<8x128xf32>
      %205 = arith.addf %110, %187 : vector<8x128xf32>
      %206 = arith.addf %111, %198 : vector<8x128xf32>
      %c2_i32_63 = arith.constant 2 : i32
      %c0_64 = arith.constant 0 : index
      %c0_65 = arith.constant 0 : index
      %c0_66 = arith.constant 0 : index
      %c0_67 = arith.constant 0 : index
      %207 = vector.load %arg5[%c0_64, %c0_65, %c0_66, %c0_67] : memref<1x4x8x128xf32, #tpu.memory_space<vmem>>, vector<1x1x8x128xf32>
      %208 = vector.shape_cast %207 : vector<1x1x8x128xf32> to vector<8x128xf32>
      %209 = arith.addf %208, %199 : vector<8x128xf32>
      %c0_68 = arith.constant 0 : index
      %c0_69 = arith.constant 0 : index
      %c0_70 = arith.constant 0 : index
      %c0_71 = arith.constant 0 : index
      %210 = vector.load %arg5[%c0_68, %c0_69, %c0_70, %c0_71] : memref<1x4x8x128xf32, #tpu.memory_space<vmem>>, vector<1x1x8x128xf32>
      %211 = vector.shape_cast %210 : vector<1x1x8x128xf32> to vector<8x128xf32>
      %212 = vector.shape_cast %209 : vector<8x128xf32> to vector<1x1x8x128xf32>
      tpu.vector_store %arg5[%c0_68, %c0_69, %c0_70, %c0_71], %212 {strides = array<i32>} : memref<1x4x8x128xf32, #tpu.memory_space<vmem>>, vector<1x1x8x128xf32>,
      %c0_72 = arith.constant 0 : index
      %c0_73 = arith.constant 0 : index
      %c0_74 = arith.constant 0 : index
      %c0_75 = arith.constant 0 : index
      %213 = vector.load %arg6[%c0_72, %c0_73, %c0_74, %c0_75] : memref<1x4x8x128xf32, #tpu.memory_space<vmem>>, vector<1x1x8x128xf32>
      %214 = vector.shape_cast %213 : vector<1x1x8x128xf32> to vector<8x128xf32>
      %215 = arith.addf %214, %203 : vector<8x128xf32>
      %c0_76 = arith.constant 0 : index
      %c0_77 = arith.constant 0 : index
      %c0_78 = arith.constant 0 : index
      %c0_79 = arith.constant 0 : index
      %216 = vector.load %arg6[%c0_76, %c0_77, %c0_78, %c0_79] : memref<1x4x8x128xf32, #tpu.memory_space<vmem>>, vector<1x1x8x128xf32>
      %217 = vector.shape_cast %216 : vector<1x1x8x128xf32> to vector<8x128xf32>
      %218 = vector.shape_cast %215 : vector<8x128xf32> to vector<1x1x8x128xf32>
      tpu.vector_store %arg6[%c0_76, %c0_77, %c0_78, %c0_79], %218 {strides = array<i32>} : memref<1x4x8x128xf32, #tpu.memory_space<vmem>>, vector<1x1x8x128xf32>,
      %c0_80 = arith.constant 0 : index
      %c1_81 = arith.constant 1 : index
      %c0_82 = arith.constant 0 : index
      %c0_83 = arith.constant 0 : index
      %219 = vector.load %arg5[%c0_80, %c1_81, %c0_82, %c0_83] : memref<1x4x8x128xf32, #tpu.memory_space<vmem>>, vector<1x1x8x128xf32>
      %220 = vector.shape_cast %219 : vector<1x1x8x128xf32> to vector<8x128xf32>
      %221 = arith.addf %220, %200 : vector<8x128xf32>
      %c0_84 = arith.constant 0 : index
      %c1_85 = arith.constant 1 : index
      %c0_86 = arith.constant 0 : index
      %c0_87 = arith.constant 0 : index
      %222 = vector.load %arg5[%c0_84, %c1_85, %c0_86, %c0_87] : memref<1x4x8x128xf32, #tpu.memory_space<vmem>>, vector<1x1x8x128xf32>
      %223 = vector.shape_cast %222 : vector<1x1x8x128xf32> to vector<8x128xf32>
      %224 = vector.shape_cast %221 : vector<8x128xf32> to vector<1x1x8x128xf32>
      tpu.vector_store %arg5[%c0_84, %c1_85, %c0_86, %c0_87], %224 {strides = array<i32>} : memref<1x4x8x128xf32, #tpu.memory_space<vmem>>, vector<1x1x8x128xf32>,
      %c0_88 = arith.constant 0 : index
      %c1_89 = arith.constant 1 : index
      %c0_90 = arith.constant 0 : index
      %c0_91 = arith.constant 0 : index
      %225 = vector.load %arg6[%c0_88, %c1_89, %c0_90, %c0_91] : memref<1x4x8x128xf32, #tpu.memory_space<vmem>>, vector<1x1x8x128xf32>
      %226 = vector.shape_cast %225 : vector<1x1x8x128xf32> to vector<8x128xf32>
      %227 = arith.addf %226, %204 : vector<8x128xf32>
      %c0_92 = arith.constant 0 : index
      %c1_93 = arith.constant 1 : index
      %c0_94 = arith.constant 0 : index
      %c0_95 = arith.constant 0 : index
      %228 = vector.load %arg6[%c0_92, %c1_93, %c0_94, %c0_95] : memref<1x4x8x128xf32, #tpu.memory_space<vmem>>, vector<1x1x8x128xf32>
      %229 = vector.shape_cast %228 : vector<1x1x8x128xf32> to vector<8x128xf32>
      %230 = vector.shape_cast %227 : vector<8x128xf32> to vector<1x1x8x128xf32>
      tpu.vector_store %arg6[%c0_92, %c1_93, %c0_94, %c0_95], %230 {strides = array<i32>} : memref<1x4x8x128xf32, #tpu.memory_space<vmem>>, vector<1x1x8x128xf32>,
      %c0_96 = arith.constant 0 : index
      %c2_97 = arith.constant 2 : index
      %c0_98 = arith.constant 0 : index
      %c0_99 = arith.constant 0 : index
      %231 = vector.load %arg5[%c0_96, %c2_97, %c0_98, %c0_99] : memref<1x4x8x128xf32, #tpu.memory_space<vmem>>, vector<1x1x8x128xf32>
      %232 = vector.shape_cast %231 : vector<1x1x8x128xf32> to vector<8x128xf32>
      %233 = arith.addf %232, %201 : vector<8x128xf32>
      %c0_100 = arith.constant 0 : index
      %c2_101 = arith.constant 2 : index
      %c0_102 = arith.constant 0 : index
      %c0_103 = arith.constant 0 : index
      %234 = vector.load %arg5[%c0_100, %c2_101, %c0_102, %c0_103] : memref<1x4x8x128xf32, #tpu.memory_space<vmem>>, vector<1x1x8x128xf32>
      %235 = vector.shape_cast %234 : vector<1x1x8x128xf32> to vector<8x128xf32>
      %236 = vector.shape_cast %233 : vector<8x128xf32> to vector<1x1x8x128xf32>
      tpu.vector_store %arg5[%c0_100, %c2_101, %c0_102, %c0_103], %236 {strides = array<i32>} : memref<1x4x8x128xf32, #tpu.memory_space<vmem>>, vector<1x1x8x128xf32>,
      %c0_104 = arith.constant 0 : index
      %c2_105 = arith.constant 2 : index
      %c0_106 = arith.constant 0 : index
      %c0_107 = arith.constant 0 : index
      %237 = vector.load %arg6[%c0_104, %c2_105, %c0_106, %c0_107] : memref<1x4x8x128xf32, #tpu.memory_space<vmem>>, vector<1x1x8x128xf32>
      %238 = vector.shape_cast %237 : vector<1x1x8x128xf32> to vector<8x128xf32>
      %239 = arith.addf %238, %205 : vector<8x128xf32>
      %c0_108 = arith.constant 0 : index
      %c2_109 = arith.constant 2 : index
      %c0_110 = arith.constant 0 : index
      %c0_111 = arith.constant 0 : index
      %240 = vector.load %arg6[%c0_108, %c2_109, %c0_110, %c0_111] : memref<1x4x8x128xf32, #tpu.memory_space<vmem>>, vector<1x1x8x128xf32>
      %241 = vector.shape_cast %240 : vector<1x1x8x128xf32> to vector<8x128xf32>
      %242 = vector.shape_cast %239 : vector<8x128xf32> to vector<1x1x8x128xf32>
      tpu.vector_store %arg6[%c0_108, %c2_109, %c0_110, %c0_111], %242 {strides = array<i32>} : memref<1x4x8x128xf32, #tpu.memory_space<vmem>>, vector<1x1x8x128xf32>,
      %c0_112 = arith.constant 0 : index
      %c3_113 = arith.constant 3 : index
      %c0_114 = arith.constant 0 : index
      %c0_115 = arith.constant 0 : index
      %243 = vector.load %arg5[%c0_112, %c3_113, %c0_114, %c0_115] : memref<1x4x8x128xf32, #tpu.memory_space<vmem>>, vector<1x1x8x128xf32>
      %244 = vector.shape_cast %243 : vector<1x1x8x128xf32> to vector<8x128xf32>
      %245 = arith.addf %244, %202 : vector<8x128xf32>
      %c0_116 = arith.constant 0 : index
      %c3_117 = arith.constant 3 : index
      %c0_118 = arith.constant 0 : index
      %c0_119 = arith.constant 0 : index
      %246 = vector.load %arg5[%c0_116, %c3_117, %c0_118, %c0_119] : memref<1x4x8x128xf32, #tpu.memory_space<vmem>>, vector<1x1x8x128xf32>
      %247 = vector.shape_cast %246 : vector<1x1x8x128xf32> to vector<8x128xf32>
      %248 = vector.shape_cast %245 : vector<8x128xf32> to vector<1x1x8x128xf32>
      tpu.vector_store %arg5[%c0_116, %c3_117, %c0_118, %c0_119], %248 {strides = array<i32>} : memref<1x4x8x128xf32, #tpu.memory_space<vmem>>, vector<1x1x8x128xf32>,
      %c0_120 = arith.constant 0 : index
      %c3_121 = arith.constant 3 : index
      %c0_122 = arith.constant 0 : index
      %c0_123 = arith.constant 0 : index
      %249 = vector.load %arg6[%c0_120, %c3_121, %c0_122, %c0_123] : memref<1x4x8x128xf32, #tpu.memory_space<vmem>>, vector<1x1x8x128xf32>
      %250 = vector.shape_cast %249 : vector<1x1x8x128xf32> to vector<8x128xf32>
      %251 = arith.addf %250, %206 : vector<8x128xf32>
      %c0_124 = arith.constant 0 : index
      %c3_125 = arith.constant 3 : index
      %c0_126 = arith.constant 0 : index
      %c0_127 = arith.constant 0 : index
      %252 = vector.load %arg6[%c0_124, %c3_125, %c0_126, %c0_127] : memref<1x4x8x128xf32, #tpu.memory_space<vmem>>, vector<1x1x8x128xf32>
      %253 = vector.shape_cast %252 : vector<1x1x8x128xf32> to vector<8x128xf32>
      %254 = vector.shape_cast %251 : vector<8x128xf32> to vector<1x1x8x128xf32>
      tpu.vector_store %arg6[%c0_124, %c3_125, %c0_126, %c0_127], %254 {strides = array<i32>} : memref<1x4x8x128xf32, #tpu.memory_space<vmem>>, vector<1x1x8x128xf32>,
    } else {
    }
    return
  }
  func.func @transform_0(%arg0: i32, %arg1: i32, %arg2: i32) -> (i32, i32, i32, i32) {
    %c1_i32 = arith.constant 1 : i32
    %0 = arith.muli %arg1, %c1_i32 : i32
    %1 = arith.addi %0, %arg2 : i32
    %c0_i32 = arith.constant 0 : i32
    %2 = arith.minsi %1, %c0_i32 : i32
    %c0_i32_0 = arith.constant 0 : i32
    %c0_i32_1 = arith.constant 0 : i32
    %c0_i32_2 = arith.constant 0 : i32
    return %arg0, %c0_i32_0, %2, %c0_i32_1 : i32, i32, i32, i32
  }
  func.func @transform_1(%arg0: i32, %arg1: i32, %arg2: i32) -> (i32, i32, i32, i32) {
    %c1_i32 = arith.constant 1 : i32
    %0 = arith.muli %arg1, %c1_i32 : i32
    %1 = arith.addi %0, %arg2 : i32
    %c0_i32 = arith.constant 0 : i32
    %2 = arith.minsi %1, %c0_i32 : i32
    %c0_i32_0 = arith.constant 0 : i32
    %c0_i32_1 = arith.constant 0 : i32
    %c0_i32_2 = arith.constant 0 : i32
    return %arg0, %c0_i32_0, %2, %c0_i32_1 : i32, i32, i32, i32
  }
  func.func @transform_2(%arg0: i32, %arg1: i32, %arg2: i32) -> (i32, i32, i32, i32) {
    %c1_i32 = arith.constant 1 : i32
    %0 = arith.muli %arg0, %c1_i32 : i32
    %1 = arith.addi %0, %arg1 : i32
    %c0_i32 = arith.constant 0 : i32
    %c0_i32_0 = arith.constant 0 : i32
    %c0_i32_1 = arith.constant 0 : i32
    %c0_i32_2 = arith.constant 0 : i32
    return %1, %c0_i32, %c0_i32_0, %c0_i32_1 : i32, i32, i32, i32
  }
  func.func @transform_3(%arg0: i32, %arg1: i32, %arg2: i32) -> (i32, i32, i32, i32) {
    %c1_i32 = arith.constant 1 : i32
    %0 = arith.muli %arg0, %c1_i32 : i32
    %1 = arith.addi %0, %arg1 : i32
    %c0_i32 = arith.constant 0 : i32
    %c0_i32_0 = arith.constant 0 : i32
    %c0_i32_1 = arith.constant 0 : i32
    %c0_i32_2 = arith.constant 0 : i32
    return %1, %c0_i32, %c0_i32_0, %c0_i32_1 : i32, i32, i32, i32
  }
}

</mosaic_0001>

<llo_original>
// kernel: tpu_custom_call.1
$region0: #{tpu_custom_call.1}
  #allocation0 [shape = 'u32[]', space=smem, size = 0x4, offset = 0x4, fixed_abs, tag = 'smem constant byte address 0x4 - core index']
  #allocation1 [shape = 'u32[144,128]{1,0:T(1,128)}', space=vmem, size = 0x12000, scoped, tag = 'internal scratch']
  %s0 = inlined_call_operand.vmem [shape: f32[2,4,10,128], index: 0, kind: input, shape index: {}]
  %s1 = inlined_call_operand.vmem [shape: s32[2,1,10,128], index: 1, kind: input, shape index: {}]
  %s2 = inlined_call_operand.hbm [shape: f32[2,4,8,128], index: 2, kind: output, shape index: {0}]
  %s3 = inlined_call_operand.hbm [shape: f32[2,4,8,128], index: 3, kind: output, shape index: {1}]
  %4 = xla_tuple %s2, %s3
  %s5 = sld [smem:[#allocation0]]
  $region61: #{tpu_custom_call.1} parent=0
    _
  %s7 = ssub.s32 1, %s5
  %s8 = scalar_select 0, %s7, %s5
  $region1: #{tpu_custom_call.1} parent=0
    #allocation2 [shape = 'u8[32768]{0}', space=vmem, size = 0x8000, scoped, tag = 'output window, operand 0']
    #allocation3 [shape = 's32[2]{0}', space=sflag, size = 0x8, scoped, tag = 'scoped memory for tpu_custom_call.1']
    #allocation4 [shape = 'u8[32768]{0}', space=vmem, size = 0x8000, scoped, tag = 'output window, operand 1']
    #allocation5 [shape = 's32[2]{0}', space=sflag, size = 0x8, scoped, tag = 'scoped memory for tpu_custom_call.1']
    %9 = vsyncpa [#allocation3], 0
    %s10 = scalar_lea.sflag [#allocation3], 1
    %11 = vsyncpa %s10, 0
    %12 = vsyncpa [#allocation5], 0
    %s13 = scalar_lea.sflag [#allocation5], 1
    %14 = vsyncpa %s13, 0
    loop: start=0, step=1, limit=4
    $region2: #{tpu_custom_call.1} parent=1 // loop_pre_header
      _
    $region3: #{tpu_custom_call.1} parent=1 // loop_header
      %s16 = sphi 0, %s20
      %p17 = scmp.ge.s32.totalorder %s16, 4
      %s23 = sphi 0, %s42
      %s24 = sphi 0, %s38
      %s25 = sphi 0, %s34
      %s26 = sphi 0, %s23
      %s27 = sphi 0, %s24
      %s28 = sphi 0, %s25
      %s29 = sphi 0, %s26
      %s30 = sphi 0, %s27
      %s31 = sphi 0, %s28
      %s53 = sphi 0, %s55
      %s56 = sphi 0, %s53
      %s57 = sphi 0, %s56
      %s73 = sphi 0, %s57
      %s87 = sphi 0, %s89
      %s90 = sphi 0, %s87
      %s91 = sphi 0, %s90
      %s107 = sphi 0, %s91
      %s115 = sphi 0, %s117
      %s118 = sphi 0, %s115
      %s119 = sphi 0, %s118
      %s135 = sphi 0, %s119
      %s143 = sphi 0, %s145
      %s146 = sphi 0, %s143
      %s147 = sphi 0, %s146
      %s163 = sphi 0, %s147
    $region4: #{tpu_custom_call.1} parent=1 // loop_header_branch
      %19 = sbr.rel (%p17) target = $region8
    $region5: #{tpu_custom_call.1} parent=1 // loop_body
      %s21 = ssub.s32 %s16, 1
      %s22 = ssub.s32 %s16, 2
      %s32 = sadd.s32 1, %s25
      %p33 = scmp.ge.s32.totalorder %s32, 1
      %s34 = scalar_select %p33, 0, %s32
      %s35 = sadd.s32 1, %s24
      %s36 = scalar_select %p33, %s35, %s24
      %p37 = scmp.ge.s32.totalorder %s36, 1
      %s38 = scalar_select %p37, 0, %s36
      %s39 = sadd.s32 1, %s23
      %s40 = scalar_select %p37, %s39, %s23
      %p41 = scmp.ge.s32.totalorder %s40, 2
      %s42 = scalar_select %p41, 0, %s40
      %s43 = sadd.s32 %s24, %s25
      %p44 = scmp.lt.s32.totalorder %s43, 0
      %s45 = scalar_select %p44, %s43, 0
      %s46 = sadd.s32 %s38, %s34
      %p47 = scmp.lt.s32.totalorder %s46, 0
      %s48 = scalar_select %p47, %s46, 0
      %s49 = ssub.s32 %s23, %s42
      %s50 = ssub.s32 %s45, %s48
      %s51 = sor.u32 %s49, %s50
      %p52 = scmp.eq.s32.totalorder %s51, 0
      %s54 = sadd.s32 %s53, 1
      %s55 = scalar_select %p52, %s53, %s54
      %p58 = pneg %p52
      %p59 = scmp.eq.s32.totalorder %s16, 1
      %p60 = por %p58, %p59
      %p61 = scmp.ne.s32.totalorder %s53, %s56
      %p62 = scmp.eq.s32.totalorder %s16, 0
      %p63 = por %p61, %p62
      %p64 = scmp.ne.s32.totalorder %s53, %s56
      %p65 = scmp.eq.s32.totalorder %s21, 1
      %p66 = por %p64, %p65
      %p67 = scmp.ne.s32.totalorder %s56, %s57
      %p68 = scmp.eq.s32.totalorder %s21, 0
      %p69 = por %p67, %p68
      %p70 = scmp.ne.s32.totalorder %s56, %s57
      %p71 = scmp.eq.s32.totalorder %s22, 1
      %p72 = por %p70, %p71
      %p74 = scmp.ne.s32.totalorder %s57, %s73
      %p75 = scmp.eq.s32.totalorder %s22, 0
      %p76 = por %p74, %p75
      %s77 = sadd.s32 %s24, %s25
      %p78 = scmp.lt.s32.totalorder %s77, 0
      %s79 = scalar_select %p78, %s77, 0
      %s80 = sadd.s32 %s38, %s34
      %p81 = scmp.lt.s32.totalorder %s80, 0
      %s82 = scalar_select %p81, %s80, 0
      %s83 = ssub.s32 %s23, %s42
      %s84 = ssub.s32 %s79, %s82
      %s85 = sor.u32 %s83, %s84
      %p86 = scmp.eq.s32.totalorder %s85, 0
      %s88 = sadd.s32 %s87, 1
      %s89 = scalar_select %p86, %s87, %s88
      %p92 = pneg %p86
      %p93 = scmp.eq.s32.totalorder %s16, 1
      %p94 = por %p92, %p93
      %p95 = scmp.ne.s32.totalorder %s87, %s90
      %p96 = scmp.eq.s32.totalorder %s16, 0
      %p97 = por %p95, %p96
      %p98 = scmp.ne.s32.totalorder %s87, %s90
      %p99 = scmp.eq.s32.totalorder %s21, 1
      %p100 = por %p98, %p99
      %p101 = scmp.ne.s32.totalorder %s90, %s91
      %p102 = scmp.eq.s32.totalorder %s21, 0
      %p103 = por %p101, %p102
      %p104 = scmp.ne.s32.totalorder %s90, %s91
      %p105 = scmp.eq.s32.totalorder %s22, 1
      %p106 = por %p104, %p105
      %p108 = scmp.ne.s32.totalorder %s91, %s107
      %p109 = scmp.eq.s32.totalorder %s22, 0
      %p110 = por %p108, %p109
      %s111 = sadd.s32 %s23, %s24
      %s112 = sadd.s32 %s42, %s38
      %s113 = ssub.s32 %s111, %s112
      %p114 = scmp.eq.s32.totalorder %s113, 0
      %s116 = sadd.s32 %s115, 1
      %s117 = scalar_select %p114, %s115, %s116
      %p120 = pneg %p114
      %p121 = scmp.eq.s32.totalorder %s16, 1
      %p122 = por %p120, %p121
      %p123 = scmp.ne.s32.totalorder %s115, %s118
      %p124 = scmp.eq.s32.totalorder %s16, 0
      %p125 = por %p123, %p124
      %p126 = scmp.ne.s32.totalorder %s115, %s118
      %p127 = scmp.eq.s32.totalorder %s21, 1
      %p128 = por %p126, %p127
      %p129 = scmp.ne.s32.totalorder %s118, %s119
      %p130 = scmp.eq.s32.totalorder %s21, 0
      %p131 = por %p129, %p130
      %p132 = scmp.ne.s32.totalorder %s118, %s119
      %p133 = scmp.eq.s32.totalorder %s22, 1
      %p134 = por %p132, %p133
      %p136 = scmp.ne.s32.totalorder %s119, %s135
      %p137 = scmp.eq.s32.totalorder %s22, 0
      %p138 = por %p136, %p137
      %s139 = sadd.s32 %s23, %s24
      %s140 = sadd.s32 %s42, %s38
      %s141 = ssub.s32 %s139, %s140
      %p142 = scmp.eq.s32.totalorder %s141, 0
      %s144 = sadd.s32 %s143, 1
      %s145 = scalar_select %p142, %s143, %s144
      %p148 = pneg %p142
      %p149 = scmp.eq.s32.totalorder %s16, 1
      %p150 = por %p148, %p149
      %p151 = scmp.ne.s32.totalorder %s143, %s146
      %p152 = scmp.eq.s32.totalorder %s16, 0
      %p153 = por %p151, %p152
      %p154 = scmp.ne.s32.totalorder %s143, %s146
      %p155 = scmp.eq.s32.totalorder %s21, 1
      %p156 = por %p154, %p155
      %p157 = scmp.ne.s32.totalorder %s146, %s147
      %p158 = scmp.eq.s32.totalorder %s21, 0
      %p159 = por %p157, %p158
      %p160 = scmp.ne.s32.totalorder %s146, %s147
      %p161 = scmp.eq.s32.totalorder %s22, 1
      %p162 = por %p160, %p161
      %p164 = scmp.ne.s32.totalorder %s147, %s163
      %p165 = scmp.eq.s32.totalorder %s22, 0
      %p166 = por %p164, %p165
      %p167 = scmp.le.s32.totalorder 1, %s16
      %p168 = scmp.lt.s32.totalorder %s16, 3
      %p169 = pnand %p167, %p168
      %p170 = pneg %p169
      // Predicated region
      $region9: #{tpu_custom_call.1} parent=5 // pred_check
        _
      $region10: #{tpu_custom_call.1} parent=5 // pred_check_branch
        %172 = sbr.rel (%p169) target = $region12
      $region11: #{tpu_custom_call.1} parent=5 // pred_region
        %s173 = ssub.s32 %s16, 1
      $region12: #{tpu_custom_call.1} parent=5 // pred_fallthru
        _
      %p174 = scmp.lt.s32.totalorder %s16, 2
      // Predicated region
      $region13: #{tpu_custom_call.1} parent=5 // pred_check
        %p175 = pneg %p174
      $region14: #{tpu_custom_call.1} parent=5 // pred_check_branch
        %177 = sbr.rel (%p175) target = $region16
      $region15: #{tpu_custom_call.1} parent=5 // pred_region
        // Predicated region
        $region17: #{tpu_custom_call.1} parent=15 // pred_check
          %p178 = pneg %p63
        $region18: #{tpu_custom_call.1} parent=15 // pred_check_branch
          %180 = sbr.rel (%p178) target = $region20
        $region19: #{tpu_custom_call.1} parent=15 // pred_region
          %s181 = sadd.s32 %s24, %s25
          %p182 = scmp.lt.s32.totalorder %s181, 0
          %s183 = scalar_select %p182, %s181, 0
          %s184 = smul.u32 2, %s183
          %p185 = scmp.lt.s32.totalorder %s23, 1
          %s186 = scalar_select %p185, %s23, 1
          %p187 = scmp.lt.s32.totalorder %s184, 1
          %s188 = scalar_select %p187, %s184, 1
          %s189 = smul.addr %s186, 8
          %s190 = sadd.s32 %s188, %s189
          %s191 = smul.addr %s190, 8
          %s192 = scalar_lea.vmem %s0, %s191
          %s193 = sadd.s32 %s24, %s25
          %p194 = scmp.lt.s32.totalorder %s193, 0
          %s195 = scalar_select %p194, %s193, 0
          %s196 = smul.u32 2, %s195
        $region20: #{tpu_custom_call.1} parent=15 // pred_fallthru
          _
        // Predicated region
        $region21: #{tpu_custom_call.1} parent=15 // pred_check
          %p197 = pneg %p97
        $region22: #{tpu_custom_call.1} parent=15 // pred_check_branch
          %199 = sbr.rel (%p197) target = $region24
        $region23: #{tpu_custom_call.1} parent=15 // pred_region
          %s200 = sadd.s32 %s24, %s25
          %p201 = scmp.lt.s32.totalorder %s200, 0
          %s202 = scalar_select %p201, %s200, 0
          %s203 = smul.u32 2, %s202
          %p204 = scmp.lt.s32.totalorder %s23, 1
          %s205 = scalar_select %p204, %s23, 1
          %p206 = scmp.lt.s32.totalorder %s203, 1
          %s207 = scalar_select %p206, %s203, 1
          %s208 = smul.addr %s205, 2
          %s209 = sadd.s32 %s207, %s208
          %s210 = smul.addr %s209, 8
          %s211 = scalar_lea.vmem %s1, %s210
          %s212 = sadd.s32 %s24, %s25
          %p213 = scmp.lt.s32.totalorder %s212, 0
          %s214 = scalar_select %p213, %s212, 0
          %s215 = smul.u32 2, %s214
        $region24: #{tpu_custom_call.1} parent=15 // pred_fallthru
          _
      $region16: #{tpu_custom_call.1} parent=5 // pred_fallthru
        _
      %p216 = scmp.le.s32.totalorder 1, %s16
      %p217 = scmp.lt.s32.totalorder %s16, 3
      %p218 = pnand %p216, %p217
      %p219 = pneg %p218
      // Predicated region
      $region25: #{tpu_custom_call.1} parent=5 // pred_check
        _
      $region26: #{tpu_custom_call.1} parent=5 // pred_check_branch
        %221 = sbr.rel (%p218) target = $region28
      $region27: #{tpu_custom_call.1} parent=5 // pred_region
        %s222 = ssub.s32 %s16, 1
        %s223 = sadd.s32 %s27, %s28
        %p224 = scmp.lt.s32.totalorder %s223, 0
        %s225 = scalar_select %p224, %s223, 0
        %s226 = smul.u32 2, %s225
        %p227 = scmp.lt.s32.totalorder %s26, 1
        %s228 = scalar_select %p227, %s26, 1
        %p229 = scmp.lt.s32.totalorder %s226, 1
        %s230 = scalar_select %p229, %s226, 1
        %s231 = smul.addr %s228, 8
        %s232 = sadd.s32 %s230, %s231
        %s233 = smul.addr %s232, 8
        %s234 = scalar_lea.vmem %s0, %s233
        %p235 = pneg %p69
        %p236 = pneg %p66
        %s237 = sadd.s32 %s27, %s28
        %p238 = scmp.lt.s32.totalorder %s237, 0
        %s239 = scalar_select %p238, %s237, 0
        %s240 = smul.u32 2, %s239
        %p241 = scmp.lt.s32.totalorder %s26, 1
        %s242 = scalar_select %p241, %s26, 1
        %p243 = scmp.lt.s32.totalorder %s240, 1
        %s244 = scalar_select %p243, %s240, 1
        %s245 = smul.addr %s242, 2
        %s246 = sadd.s32 %s244, %s245
        %s247 = smul.addr %s246, 8
        %s248 = scalar_lea.vmem %s1, %s247
        %p249 = pneg %p103
        %p250 = pneg %p100
        %p251 = pneg %p131
        %p252 = pneg %p128
        %s253 = sand.u32 %s118, 1
        %s254 = scalar_lea.sflag [#allocation3], %s253
        %s255 = sand.u32 %s118, 1
        %s256 = smul.addr %s255, 32
        %s257 = scalar_lea.vmem [#allocation2], %s256
        %p258 = pneg %p159
        %p259 = pneg %p156
        %s260 = sand.u32 %s146, 1
        %s261 = scalar_lea.sflag [#allocation5], %s260
        %s262 = sand.u32 %s146, 1
        %s263 = smul.addr %s262, 32
        %s264 = scalar_lea.vmem [#allocation4], %s263
        %s265 = sadd.s32 %s27, %s28
        %p266 = scmp.lt.s32.totalorder %s265, 0
        %s267 = scalar_select %p266, %s265, 0
        %s268 = smul.u32 2, %s267
        %p269 = scmp.lt.s32.totalorder %s26, 1
        %s270 = scalar_select %p269, %s26, 1
        %p271 = scmp.lt.s32.totalorder %s268, 1
        %s272 = scalar_select %p271, %s268, 1
        %s273 = smul.addr %s270, 8
        %s274 = sadd.s32 %s272, %s273
        %s275 = smul.addr %s274, 8
        %s276 = scalar_lea.vmem %s0, %s275
        %s277 = sadd.s32 %s27, %s28
        %p278 = scmp.lt.s32.totalorder %s277, 0
        %s279 = scalar_select %p278, %s277, 0
        %s280 = smul.u32 2, %s279
        %s281 = sadd.s32 %s27, %s28
        %p282 = scmp.lt.s32.totalorder %s281, 0
        %s283 = scalar_select %p282, %s281, 0
        %s284 = smul.u32 2, %s283
        %p285 = scmp.lt.s32.totalorder %s26, 1
        %s286 = scalar_select %p285, %s26, 1
        %p287 = scmp.lt.s32.totalorder %s284, 1
        %s288 = scalar_select %p287, %s284, 1
        %s289 = smul.addr %s286, 2
        %s290 = sadd.s32 %s288, %s289
        %s291 = smul.addr %s290, 8
        %s292 = scalar_lea.vmem %s1, %s291
        %s293 = sadd.s32 %s27, %s28
        %p294 = scmp.lt.s32.totalorder %s293, 0
        %s295 = scalar_select %p294, %s293, 0
        %s296 = smul.u32 2, %s295
        %s297 = sadd.s32 %s26, %s27
        %s298 = sadd.s32 %s26, %s27
        %p299 = scmp.eq.s32.totalorder %s28, 0
        // Predicated region
        $region29: #{tpu_custom_call.1} parent=27 // pred_check
          %p300 = pneg %p299
        $region30: #{tpu_custom_call.1} parent=27 // pred_check_branch
          %302 = sbr.rel (%p300) target = $region32
        $region31: #{tpu_custom_call.1} parent=27 // pred_region
          %303 = vst [vmem:[%s257] sm:$0xff] 0.0
          %304 = vst [vmem:[%s257 + $0x8] sm:$0xff] 0.0
          %305 = vst [vmem:[%s257 + $0x10] sm:$0xff] 0.0
          %306 = vst [vmem:[%s257 + $0x18] sm:$0xff] 0.0
          %307 = vst [vmem:[%s264] sm:$0xff] 0.0
          %308 = vst [vmem:[%s264 + $0x8] sm:$0xff] 0.0
          %309 = vst [vmem:[%s264 + $0x10] sm:$0xff] 0.0
          %310 = vst [vmem:[%s264 + $0x18] sm:$0xff] 0.0
        $region32: #{tpu_custom_call.1} parent=27 // pred_fallthru
          _
        %s311 = sadd.s32 %s27, %s28
        %s312 = smul.u32 %s311, 2048
        %s313 = sadd.s32 %s312, 2048
        %p314 = scmp.le.s32.totalorder %s313, 1280
        // Predicated region
        $region33: #{tpu_custom_call.1} parent=27 // pred_check
          %p315 = pneg %p314
        $region34: #{tpu_custom_call.1} parent=27 // pred_check_branch
          %317 = sbr.rel (%p315) target = $region36
        $region35: #{tpu_custom_call.1} parent=27 // pred_region
          %v318 = vld [vmem:[%s276] sm:$0xff]
          %s319 = sadd.s32 0, 16
          %s320 = scalar_lea.vmem %s276, %s319
          %v321 = vld [vmem:[%s320] sm:$0xff]
          %s322 = sadd.s32 0, 32
          %s323 = scalar_lea.vmem %s276, %s322
          %v324 = vld [vmem:[%s323] sm:$0xff]
          %s325 = sadd.s32 0, 48
          %s326 = scalar_lea.vmem %s276, %s325
          %v327 = vld [vmem:[%s326] sm:$0xff]
          %v328 = vld [vmem:[%s292] sm:$0xff]
          %v329 = vmax.f32 %v318, %v321
          %v330 = vmax.f32 %v329, %v324
          %v331 = vmax.f32 %v330, %v327
          %v332 = vsub.f32 %v318, %v331
          %v333 = vmul.f32 %v332, 1.442695
          %v334 = vpow.pop %v333
          %v335 = vsub.f32 %v321, %v331
          %v336 = vmul.f32 %v335, 1.442695
          %v337 = vpow.pop %v336
          %v338 = vsub.f32 %v324, %v331
          %v339 = vmul.f32 %v338, 1.442695
          %v340 = vpow.pop %v339
          %v341 = vsub.f32 %v327, %v331
          %v342 = vmul.f32 %v341, 1.442695
          %v343 = vpow.pop %v342
          %v344 = vadd.f32 %v334, %v337
          %v345 = vadd.f32 %v344, %v340
          %v346 = vadd.f32 %v345, %v343
          %v347 = vrcp.pop %v346
          %v348 = vmul.f32 %v334, %v347
          %vm349 = vcmp.eq.s32.totalorder %v328, 0
          %v350 = vsel %vm349, 1, 0
          %v351 = vcvt.s32.f32 %v350
          %v352 = vmul.f32 %v348, %v351
          %v353 = vadd.f32 %v348, %v351
          %v354 = vmul.f32 %v337, %v347
          %vm355 = vcmp.eq.s32.totalorder %v328, 1
          %v356 = vsel %vm355, 1, 0
          %v357 = vcvt.s32.f32 %v356
          %v358 = vmul.f32 %v354, %v357
          %v359 = vadd.f32 %v354, %v357
          %v360 = vmul.f32 %v340, %v347
          %vm361 = vcmp.eq.s32.totalorder %v328, 2
          %v362 = vsel %vm361, 1, 0
          %v363 = vcvt.s32.f32 %v362
          %v364 = vmul.f32 %v360, %v363
          %v365 = vadd.f32 %v360, %v363
          %v366 = vmul.f32 %v343, %v347
          %vm367 = vcmp.eq.s32.totalorder %v328, 3
          %v368 = vsel %vm367, 1, 0
          %v369 = vcvt.s32.f32 %v368
          %v370 = vmul.f32 %v366, %v369
          %v371 = vadd.f32 %v366, %v369
          %v372 = vadd.f32 %v352, 0.0
          %v373 = vadd.f32 %v358, 0.0
          %v374 = vadd.f32 %v364, 0.0
          %v375 = vadd.f32 %v370, 0.0
          %v376 = vadd.f32 %v353, 0.0
          %v377 = vadd.f32 %v359, 0.0
          %v378 = vadd.f32 %v365, 0.0
          %v379 = vadd.f32 %v371, 0.0
          %s380 = scalar_lea.vmem %s276, 8
          %v381 = vld [vmem:[%s380] sm:$0xff]
          %s382 = sadd.s32 8, 16
          %s383 = scalar_lea.vmem %s276, %s382
          %v384 = vld [vmem:[%s383] sm:$0xff]
          %s385 = sadd.s32 8, 32
          %s386 = scalar_lea.vmem %s276, %s385
          %v387 = vld [vmem:[%s386] sm:$0xff]
          %s388 = sadd.s32 8, 48
          %s389 = scalar_lea.vmem %s276, %s388
          %v390 = vld [vmem:[%s389] sm:$0xff]
          %s391 = scalar_lea.vmem %s292, 8
          %v392 = vld [vmem:[%s391] sm:$0xff]
          %v393 = vmax.f32 %v381, %v384
          %v394 = vmax.f32 %v393, %v387
          %v395 = vmax.f32 %v394, %v390
          %v396 = vsub.f32 %v381, %v395
          %v397 = vmul.f32 %v396, 1.442695
          %v398 = vpow.pop %v397
          %v399 = vsub.f32 %v384, %v395
          %v400 = vmul.f32 %v399, 1.442695
          %v401 = vpow.pop %v400
          %v402 = vsub.f32 %v387, %v395
          %v403 = vmul.f32 %v402, 1.442695
          %v404 = vpow.pop %v403
          %v405 = vsub.f32 %v390, %v395
          %v406 = vmul.f32 %v405, 1.442695
          %v407 = vpow.pop %v406
          %v408 = vadd.f32 %v398, %v401
          %v409 = vadd.f32 %v408, %v404
          %v410 = vadd.f32 %v409, %v407
          %v411 = vrcp.pop %v410
          %v412 = vmul.f32 %v398, %v411
          %vm413 = vcmp.eq.s32.totalorder %v392, 0
          %v414 = vsel %vm413, 1, 0
          %v415 = vcvt.s32.f32 %v414
          %v416 = vmul.f32 %v412, %v415
          %v417 = vadd.f32 %v412, %v415
          %v418 = vmul.f32 %v401, %v411
          %vm419 = vcmp.eq.s32.totalorder %v392, 1
          %v420 = vsel %vm419, 1, 0
          %v421 = vcvt.s32.f32 %v420
          %v422 = vmul.f32 %v418, %v421
          %v423 = vadd.f32 %v418, %v421
          %v424 = vmul.f32 %v404, %v411
          %vm425 = vcmp.eq.s32.totalorder %v392, 2
          %v426 = vsel %vm425, 1, 0
          %v427 = vcvt.s32.f32 %v426
          %v428 = vmul.f32 %v424, %v427
          %v429 = vadd.f32 %v424, %v427
          %v430 = vmul.f32 %v407, %v411
          %vm431 = vcmp.eq.s32.totalorder %v392, 3
          %v432 = vsel %vm431, 1, 0
          %v433 = vcvt.s32.f32 %v432
          %v434 = vmul.f32 %v430, %v433
          %v435 = vadd.f32 %v430, %v433
          %v436 = vadd.f32 %v372, %v416
          %v437 = vadd.f32 %v373, %v422
          %v438 = vadd.f32 %v374, %v428
          %v439 = vadd.f32 %v375, %v434
          %v440 = vadd.f32 %v376, %v417
          %v441 = vadd.f32 %v377, %v423
          %v442 = vadd.f32 %v378, %v429
          %v443 = vadd.f32 %v379, %v435
          %v444 = vld [vmem:[%s257] sm:$0xff]
          %v445 = vadd.f32 %v444, %v436
          %446 = vst [vmem:[%s257] sm:$0xff] %v445
          %v447 = vld [vmem:[%s264] sm:$0xff]
          %v448 = vadd.f32 %v447, %v440
          %449 = vst [vmem:[%s264] sm:$0xff] %v448
          %s450 = scalar_lea.vmem %s257, 8 [#allocation2]
          %v451 = vld [vmem:[%s450] sm:$0xff]
          %v452 = vadd.f32 %v451, %v437
          %453 = vst [vmem:[%s450] sm:$0xff] %v452
          %s454 = scalar_lea.vmem %s264, 8 [#allocation4]
          %v455 = vld [vmem:[%s454] sm:$0xff]
          %v456 = vadd.f32 %v455, %v441
          %457 = vst [vmem:[%s454] sm:$0xff] %v456
          %s458 = scalar_lea.vmem %s257, 16 [#allocation2]
          %v459 = vld [vmem:[%s458] sm:$0xff]
          %v460 = vadd.f32 %v459, %v438
          %461 = vst [vmem:[%s458] sm:$0xff] %v460
          %s462 = scalar_lea.vmem %s264, 16 [#allocation4]
          %v463 = vld [vmem:[%s462] sm:$0xff]
          %v464 = vadd.f32 %v463, %v442
          %465 = vst [vmem:[%s462] sm:$0xff] %v464
          %s466 = scalar_lea.vmem %s257, 24 [#allocation2]
          %v467 = vld [vmem:[%s466] sm:$0xff]
          %v468 = vadd.f32 %v467, %v439
          %469 = vst [vmem:[%s466] sm:$0xff] %v468
          %s470 = scalar_lea.vmem %s264, 24 [#allocation4]
          %v471 = vld [vmem:[%s470] sm:$0xff]
          %v472 = vadd.f32 %v471, %v443
          %473 = vst [vmem:[%s470] sm:$0xff] %v472
        $region36: #{tpu_custom_call.1} parent=27 // pred_fallthru
          _
        %p474 = scmp.gt.s32.totalorder %s313, 1280
        // Predicated region
        $region37: #{tpu_custom_call.1} parent=27 // pred_check
          %p475 = pneg %p474
        $region38: #{tpu_custom_call.1} parent=27 // pred_check_branch
          %477 = sbr.rel (%p475) target = $region40
        $region39: #{tpu_custom_call.1} parent=27 // pred_region
          %v478 = vld [vmem:[%s276] sm:$0xff]
          %s479 = sadd.s32 0, 16
          %s480 = scalar_lea.vmem %s276, %s479
          %v481 = vld [vmem:[%s480] sm:$0xff]
          %s482 = sadd.s32 0, 32
          %s483 = scalar_lea.vmem %s276, %s482
          %v484 = vld [vmem:[%s483] sm:$0xff]
          %s485 = sadd.s32 0, 48
          %s486 = scalar_lea.vmem %s276, %s485
          %v487 = vld [vmem:[%s486] sm:$0xff]
          %v488 = vld [vmem:[%s292] sm:$0xff]
          %v489 = vmax.f32 %v478, %v481
          %v490 = vmax.f32 %v489, %v484
          %v491 = vmax.f32 %v490, %v487
          %v492 = vsub.f32 %v478, %v491
          %v493 = vmul.f32 %v492, 1.442695
          %v494 = vpow.pop %v493
          %v495 = vsub.f32 %v481, %v491
          %v496 = vmul.f32 %v495, 1.442695
          %v497 = vpow.pop %v496
          %v498 = vsub.f32 %v484, %v491
          %v499 = vmul.f32 %v498, 1.442695
          %v500 = vpow.pop %v499
          %v501 = vsub.f32 %v487, %v491
          %v502 = vmul.f32 %v501, 1.442695
          %v503 = vpow.pop %v502
          %v504 = vadd.f32 %v494, %v497
          %v505 = vadd.f32 %v504, %v500
          %v506 = vadd.f32 %v505, %v503
          %v507 = vrcp.pop %v506
          %v508 = vlaneseq
          %v509 = vshrl.u32 %v508, 7
          %v510 = vlaneseq
          %v511 = vand.u32 %v510, 127
          %s512 = smul.u32 0, 128
          %s513 = sadd.s32 %s312, %s512
          %v514 = vmul.u32 %v509, 128
          %v515 = vstv %s513
          %v516 = vadd.s32 %v515, %v514
          %v517 = vadd.s32 %v516, %v511
          %vm518 = vcmp.lt.s32.totalorder %v517, 1280
          %v519 = vmul.f32 %v494, %v507
          %vm520 = vcmp.eq.s32.totalorder %v488, 0
          %v521 = vsel %vm520, 1, 0
          %v522 = vcvt.s32.f32 %v521
          %v523 = vmul.f32 %v519, %v522
          %v524 = vadd.f32 %v519, %v522
          %v525 = vsel %vm518, %v523, 0.0
          %v526 = vsel %vm518, %v524, 0.0
          %v527 = vmul.f32 %v497, %v507
          %vm528 = vcmp.eq.s32.totalorder %v488, 1
          %v529 = vsel %vm528, 1, 0
          %v530 = vcvt.s32.f32 %v529
          %v531 = vmul.f32 %v527, %v530
          %v532 = vadd.f32 %v527, %v530
          %v533 = vsel %vm518, %v531, 0.0
          %v534 = vsel %vm518, %v532, 0.0
          %v535 = vmul.f32 %v500, %v507
          %vm536 = vcmp.eq.s32.totalorder %v488, 2
          %v537 = vsel %vm536, 1, 0
          %v538 = vcvt.s32.f32 %v537
          %v539 = vmul.f32 %v535, %v538
          %v540 = vadd.f32 %v535, %v538
          %v541 = vsel %vm518, %v539, 0.0
          %v542 = vsel %vm518, %v540, 0.0
          %v543 = vmul.f32 %v503, %v507
          %vm544 = vcmp.eq.s32.totalorder %v488, 3
          %v545 = vsel %vm544, 1, 0
          %v546 = vcvt.s32.f32 %v545
          %v547 = vmul.f32 %v543, %v546
          %v548 = vadd.f32 %v543, %v546
          %v549 = vsel %vm518, %v547, 0.0
          %v550 = vsel %vm518, %v548, 0.0
          %v551 = vadd.f32 %v525, 0.0
          %v552 = vadd.f32 %v533, 0.0
          %v553 = vadd.f32 %v541, 0.0
          %v554 = vadd.f32 %v549, 0.0
          %v555 = vadd.f32 %v526, 0.0
          %v556 = vadd.f32 %v534, 0.0
          %v557 = vadd.f32 %v542, 0.0
          %v558 = vadd.f32 %v550, 0.0
          %s559 = scalar_lea.vmem %s276, 8
          %v560 = vld [vmem:[%s559] sm:$0xff]
          %s561 = sadd.s32 8, 16
          %s562 = scalar_lea.vmem %s276, %s561
          %v563 = vld [vmem:[%s562] sm:$0xff]
          %s564 = sadd.s32 8, 32
          %s565 = scalar_lea.vmem %s276, %s564
          %v566 = vld [vmem:[%s565] sm:$0xff]
          %s567 = sadd.s32 8, 48
          %s568 = scalar_lea.vmem %s276, %s567
          %v569 = vld [vmem:[%s568] sm:$0xff]
          %s570 = scalar_lea.vmem %s292, 8
          %v571 = vld [vmem:[%s570] sm:$0xff]
          %v572 = vmax.f32 %v560, %v563
          %v573 = vmax.f32 %v572, %v566
          %v574 = vmax.f32 %v573, %v569
          %v575 = vsub.f32 %v560, %v574
          %v576 = vmul.f32 %v575, 1.442695
          %v577 = vpow.pop %v576
          %v578 = vsub.f32 %v563, %v574
          %v579 = vmul.f32 %v578, 1.442695
          %v580 = vpow.pop %v579
          %v581 = vsub.f32 %v566, %v574
          %v582 = vmul.f32 %v581, 1.442695
          %v583 = vpow.pop %v582
          %v584 = vsub.f32 %v569, %v574
          %v585 = vmul.f32 %v584, 1.442695
          %v586 = vpow.pop %v585
          %v587 = vadd.f32 %v577, %v580
          %v588 = vadd.f32 %v587, %v583
          %v589 = vadd.f32 %v588, %v586
          %v590 = vrcp.pop %v589
          %s591 = smul.u32 8, 128
          %s592 = sadd.s32 %s312, %s591
          %v593 = vstv %s592
          %v594 = vadd.s32 %v593, %v514
          %v595 = vadd.s32 %v594, %v511
          %vm596 = vcmp.lt.s32.totalorder %v595, 1280
          %v597 = vmul.f32 %v577, %v590
          %vm598 = vcmp.eq.s32.totalorder %v571, 0
          %v599 = vsel %vm598, 1, 0
          %v600 = vcvt.s32.f32 %v599
          %v601 = vmul.f32 %v597, %v600
          %v602 = vadd.f32 %v597, %v600
          %v603 = vsel %vm596, %v601, 0.0
          %v604 = vsel %vm596, %v602, 0.0
          %v605 = vmul.f32 %v580, %v590
          %vm606 = vcmp.eq.s32.totalorder %v571, 1
          %v607 = vsel %vm606, 1, 0
          %v608 = vcvt.s32.f32 %v607
          %v609 = vmul.f32 %v605, %v608
          %v610 = vadd.f32 %v605, %v608
          %v611 = vsel %vm596, %v609, 0.0
          %v612 = vsel %vm596, %v610, 0.0
          %v613 = vmul.f32 %v583, %v590
          %vm614 = vcmp.eq.s32.totalorder %v571, 2
          %v615 = vsel %vm614, 1, 0
          %v616 = vcvt.s32.f32 %v615
          %v617 = vmul.f32 %v613, %v616
          %v618 = vadd.f32 %v613, %v616
          %v619 = vsel %vm596, %v617, 0.0
          %v620 = vsel %vm596, %v618, 0.0
          %v621 = vmul.f32 %v586, %v590
          %vm622 = vcmp.eq.s32.totalorder %v571, 3
          %v623 = vsel %vm622, 1, 0
          %v624 = vcvt.s32.f32 %v623
          %v625 = vmul.f32 %v621, %v624
          %v626 = vadd.f32 %v621, %v624
          %v627 = vsel %vm596, %v625, 0.0
          %v628 = vsel %vm596, %v626, 0.0
          %v629 = vadd.f32 %v551, %v603
          %v630 = vadd.f32 %v552, %v611
          %v631 = vadd.f32 %v553, %v619
          %v632 = vadd.f32 %v554, %v627
          %v633 = vadd.f32 %v555, %v604
          %v634 = vadd.f32 %v556, %v612
          %v635 = vadd.f32 %v557, %v620
          %v636 = vadd.f32 %v558, %v628
          %v637 = vld [vmem:[%s257] sm:$0xff]
          %v638 = vadd.f32 %v637, %v629
          %639 = vst [vmem:[%s257] sm:$0xff] %v638
          %v640 = vld [vmem:[%s264] sm:$0xff]
          %v641 = vadd.f32 %v640, %v633
          %642 = vst [vmem:[%s264] sm:$0xff] %v641
          %s643 = scalar_lea.vmem %s257, 8 [#allocation2]
          %v644 = vld [vmem:[%s643] sm:$0xff]
          %v645 = vadd.f32 %v644, %v630
          %646 = vst [vmem:[%s643] sm:$0xff] %v645
          %s647 = scalar_lea.vmem %s264, 8 [#allocation4]
          %v648 = vld [vmem:[%s647] sm:$0xff]
          %v649 = vadd.f32 %v648, %v634
          %650 = vst [vmem:[%s647] sm:$0xff] %v649
          %s651 = scalar_lea.vmem %s257, 16 [#allocation2]
          %v652 = vld [vmem:[%s651] sm:$0xff]
          %v653 = vadd.f32 %v652, %v631
          %654 = vst [vmem:[%s651] sm:$0xff] %v653
          %s655 = scalar_lea.vmem %s264, 16 [#allocation4]
          %v656 = vld [vmem:[%s655] sm:$0xff]
          %v657 = vadd.f32 %v656, %v635
          %658 = vst [vmem:[%s655] sm:$0xff] %v657
          %s659 = scalar_lea.vmem %s257, 24 [#allocation2]
          %v660 = vld [vmem:[%s659] sm:$0xff]
          %v661 = vadd.f32 %v660, %v632
          %662 = vst [vmem:[%s659] sm:$0xff] %v661
          %s663 = scalar_lea.vmem %s264, 24 [#allocation4]
          %v664 = vld [vmem:[%s663] sm:$0xff]
          %v665 = vadd.f32 %v664, %v636
          %666 = vst [vmem:[%s663] sm:$0xff] %v665
        $region40: #{tpu_custom_call.1} parent=27 // pred_fallthru
          _
        %s667 = sand.u32 %s118, 1
        %s668 = scalar_lea.sflag [#allocation3], %s667
        %s669 = sand.u32 %s118, 1
        %s670 = smul.addr %s669, 32
        %s671 = scalar_lea.vmem [#allocation2], %s670
        %s672 = sand.u32 %s146, 1
        %s673 = scalar_lea.sflag [#allocation5], %s672
        %s674 = sand.u32 %s146, 1
        %s675 = smul.addr %s674, 32
        %s676 = scalar_lea.vmem [#allocation4], %s675
        // Predicated region
        $region41: #{tpu_custom_call.1} parent=27 // pred_check
          %p677 = pneg %p128
        $region42: #{tpu_custom_call.1} parent=27 // pred_check_branch
          %679 = sbr.rel (%p677) target = $region44
        $region43: #{tpu_custom_call.1} parent=27 // pred_region
          %s680 = sadd.s32 %s26, %s27
          %s682 = ssub.s32 512, 512
          %683 = vsyncadd %s668, %s682
          %s684 = smul.addr %s680, 4
          %s685 = smul.addr %s684, 128
          %s686 = scalar_lea.hbm %s2, %s685
          %s687 = sshll.u32 %s671, 4
          %s688 = int_to_ptr.vmem [resolvable:$true] %s687
          %693 = dma.vmem_to_hbm [thread:$0]  %s688, 512, %s686, %s668, 128, 128, 8
        $region44: #{tpu_custom_call.1} parent=27 // pred_fallthru
          _
        // Predicated region
        $region45: #{tpu_custom_call.1} parent=27 // pred_check
          %p694 = pneg %p156
        $region46: #{tpu_custom_call.1} parent=27 // pred_check_branch
          %696 = sbr.rel (%p694) target = $region48
        $region47: #{tpu_custom_call.1} parent=27 // pred_region
          %s697 = sadd.s32 %s26, %s27
          %s699 = ssub.s32 512, 512
          %700 = vsyncadd %s673, %s699
          %s701 = smul.addr %s697, 4
          %s702 = smul.addr %s701, 128
          %s703 = scalar_lea.hbm %s3, %s702
          %s704 = sshll.u32 %s676, 4
          %s705 = int_to_ptr.vmem [resolvable:$true] %s704
          %710 = dma.vmem_to_hbm [thread:$0]  %s705, 512, %s703, %s673, 128, 128, 8
        $region48: #{tpu_custom_call.1} parent=27 // pred_fallthru
          _
      $region28: #{tpu_custom_call.1} parent=5 // pred_fallthru
        _
      %p711 = scmp.le.s32.totalorder 2, %s16
      // Predicated region
      $region49: #{tpu_custom_call.1} parent=5 // pred_check
        %p712 = pneg %p711
      $region50: #{tpu_custom_call.1} parent=5 // pred_check_branch
        %714 = sbr.rel (%p712) target = $region52
      $region51: #{tpu_custom_call.1} parent=5 // pred_region
        %s715 = ssub.s32 %s16, 2
        // Predicated region
        $region53: #{tpu_custom_call.1} parent=51 // pred_check
          %p716 = pneg %p134
        $region54: #{tpu_custom_call.1} parent=51 // pred_check_branch
          %718 = sbr.rel (%p716) target = $region56
        $region55: #{tpu_custom_call.1} parent=51 // pred_region
          %s719 = sand.u32 %s119, 1
          %s720 = scalar_lea.sflag [#allocation3], %s719
          %s721 = sand.u32 %s119, 1
          %s722 = smul.addr %s721, 32
          %s723 = scalar_lea.vmem [#allocation2], %s722
          %724 = dma.done %s720, 512
        $region56: #{tpu_custom_call.1} parent=51 // pred_fallthru
          _
        // Predicated region
        $region57: #{tpu_custom_call.1} parent=51 // pred_check
          %p725 = pneg %p162
        $region58: #{tpu_custom_call.1} parent=51 // pred_check_branch
          %727 = sbr.rel (%p725) target = $region60
        $region59: #{tpu_custom_call.1} parent=51 // pred_region
          %s728 = sand.u32 %s147, 1
          %s729 = scalar_lea.sflag [#allocation5], %s728
          %s730 = sand.u32 %s147, 1
          %s731 = smul.addr %s730, 32
          %s732 = scalar_lea.vmem [#allocation4], %s731
          %733 = dma.done %s729, 512
        $region60: #{tpu_custom_call.1} parent=51 // pred_fallthru
          _
      $region52: #{tpu_custom_call.1} parent=5 // pred_fallthru
        _
    $region6: #{tpu_custom_call.1} parent=1 // loop_footer
      %s20 = sadd.s32 1, %s16
    $region7: #{tpu_custom_call.1} parent=1 // loop_footer_branch
      %15 = sbr.rel target = $region3
    $region8: #{tpu_custom_call.1} parent=1 // loop_exit
      _
    %734 = vsyncpa [#allocation3], 1
    %s735 = scalar_lea.sflag [#allocation3], 1
    %736 = vsyncpa %s735, 1
    %737 = vsyncpa [#allocation5], 1
    %s738 = scalar_lea.sflag [#allocation5], 1
    %739 = vsyncpa %s738, 1

</llo_original>
